<compile_context>
chip_gen: v7x
topology: tpu7x:2x2x1
jax: 0.10.0
libtpu: 0.0.40
codegen_flags: <defaults>
</compile_context>

<pallas_src>
import jax
import jax.numpy as jnp
from jax import lax
from jax.experimental import pallas as pl
from jax.experimental.pallas import tpu as pltpu


def _lstm_kernel(x_ref, w_ih_ref, b_ref, w_hh_ref, w_lin_ref, b_lin_ref, out_ref):
    """x_ref:     (T, B, In)   f32   raw input sequence
       w_ih_ref:  (In, 4*Hp)   f32   input->gates weights, gate order [i,f,o,g]
       b_ref:     (1, 4*Hp)    f32   combined bias (b_ih + b_hh)
       w_hh_ref:  (Hp, 4*Hp)   bf16  recurrent weights
       w_lin_ref: (out, Hp)    f32   final Linear weights (row per output)
       b_lin_ref: (1, out)     f32
       out_ref:   (B, out)     f32
    """
    T, B, In = x_ref.shape
    Hp = w_hh_ref.shape[0]
    out_size = w_lin_ref.shape[0]

    def step(t, carry):
        h, c = carry
        # Fused input projection: In is tiny, so a VPU broadcast MAC per input
        # feature. This term does not depend on h, so it sits off the serial
        # h->h critical path in the unrolled body.
        x_t = x_ref[t]                                   # (B, In)
        xw = b_ref[...]                                  # (1, 4*Hp), broadcasts
        for i in range(In):
            xw = xw + x_t[:, i:i + 1] * w_ih_ref[i:i + 1, :]   # (B,1)*(1,4*Hp)

        # Recurrent matmul: bf16 operands, f32 accumulate. W_hh streamed from
        # VMEM by the MXU (no vreg hoist).
        gates = xw + jnp.dot(h.astype(jnp.bfloat16), w_hh_ref[...],
                             preferred_element_type=jnp.float32)

        # Gate order [i, f, o, g]: one sigmoid over 3*Hp lanes, one tanh.
        ifo = jax.nn.sigmoid(gates[:, :3 * Hp])
        g_g = jnp.tanh(gates[:, 3 * Hp:])
        i_g = ifo[:, 0 * Hp:1 * Hp]
        f_g = ifo[:, 1 * Hp:2 * Hp]
        o_g = ifo[:, 2 * Hp:3 * Hp]

        c_new = f_g * c + i_g * g_g
        h_new = o_g * jnp.tanh(c_new)
        return (h_new, c_new)

    h0 = jnp.zeros((B, Hp), jnp.float32)
    c0 = jnp.zeros((B, Hp), jnp.float32)
    h_last, _ = lax.fori_loop(0, T, step, (h0, c0), unroll=True)

    # Final Linear on the last hidden state as VPU multiply + lane reduction
    # (output_size is tiny) — keeps an almost-empty MXU pass off the tail.
    cols = [jnp.sum(h_last * w_lin_ref[j:j + 1, :], axis=-1, keepdims=True)
            for j in range(out_size)]
    out = cols[0] if out_size == 1 else jnp.concatenate(cols, axis=-1)
    out_ref[...] = (out + b_lin_ref[...]).astype(out_ref.dtype)


def prepare_lstm_params(w_ih, w_hh, b_ih, b_hh, w_lin, b_lin):
    """One-time weight prep (call at parameter-init time, NOT per forward).

    Reorders gates to [i, f, o, g], zero-pads the hidden dim to a lane tile
    (Hp = 128-multiple), transposes to (K, 4*Hp) layout, combines biases, and
    stores W_hh in bf16 for the MXU. Zero padding keeps padded h/c lanes at
    exactly zero for all timesteps (see kernel header comment).
    """
    four_h, _in_size = w_ih.shape
    H = four_h // 4
    out_size = w_lin.shape[0]
    Hp = max(128, ((H + 127) // 128) * 128)
    perm = jnp.array([0, 1, 3, 2])   # PyTorch [i,f,g,o] -> kernel [i,f,o,g]

    def gate_cols(w):
        # (4H, K) -> (K, 4*Hp): reorder gate blocks, zero-pad each to Hp lanes.
        K = w.shape[1]
        w4 = jnp.asarray(w, jnp.float32).reshape(4, H, K)[perm]
        w4 = jnp.pad(w4, ((0, 0), (0, Hp - H), (0, 0)))          # (4, Hp, K)
        return jnp.transpose(w4, (2, 0, 1)).reshape(K, 4 * Hp)   # (K, 4*Hp)

    w_ih_p = gate_cols(w_ih)                                              # (In, 4*Hp) f32
    w_hh_p = jnp.pad(gate_cols(w_hh), ((0, Hp - H), (0, 0)))              # (Hp, 4*Hp)
    w_hh_p = w_hh_p.astype(jnp.bfloat16)
    b_p = gate_cols(jnp.asarray(b_ih + b_hh, jnp.float32).reshape(four_h, 1))  # (1, 4*Hp)
    w_lin_p = jnp.pad(jnp.asarray(w_lin, jnp.float32), ((0, 0), (0, Hp - H)))  # (out, Hp)
    b_lin_p = jnp.asarray(b_lin, jnp.float32).reshape(1, out_size)             # (1, out)

    return {"w_ih": w_ih_p, "b": b_p, "w_hh": w_hh_p,
            "w_lin": w_lin_p, "b_lin": b_lin_p}


def lstm_forward(x, params):
    """x: (seq_len, batch, input_size) -> (batch, output_size)."""
    x = jnp.asarray(x, jnp.float32)
    _T, batch, _In = x.shape
    out_size = params["w_lin"].shape[0]

    vmem = pl.BlockSpec(memory_space=pltpu.MemorySpace.VMEM)
    # Single kernel invocation (no grid): every operand is one untiled
    # VMEM-resident block; the recurrence runs fully unrolled inside.
    # B=2 -> no batch grid axis; add a "parallel" batch axis only if batch
    # grows enough to feed both v7x TensorCores.
    return pl.pallas_call(
        _lstm_kernel,
        out_shape=jax.ShapeDtypeStruct((batch, out_size), jnp.float32),
        in_specs=[vmem] * 6,
        out_specs=vmem,
    )(x, params["w_ih"], params["b"], params["w_hh"],
      params["w_lin"], params["b_lin"])


def _reference(x, w_ih, w_hh, b_ih, b_hh, w_lin, b_lin):
    """Pure-JAX reference matching torch.nn.LSTM (+ Linear) semantics."""
    H = w_hh.shape[1]
    batch = x.shape[1]

    def step(carry, x_t):
        h, c = carry
        gates = x_t @ w_ih.T + b_ih + h @ w_hh.T + b_hh
        i = jax.nn.sigmoid(gates[:, 0 * H:1 * H])
        f = jax.nn.sigmoid(gates[:, 1 * H:2 * H])
        g = jnp.tanh(gates[:, 2 * H:3 * H])
        o = jax.nn.sigmoid(gates[:, 3 * H:4 * H])
        c = f * c + i * g
        h = o * jnp.tanh(c)
        return (h, c), None

    h0 = jnp.zeros((batch, H), jnp.float32)
    c0 = jnp.zeros((batch, H), jnp.float32)
    (h_last, _), _ = jax.lax.scan(step, (h0, c0), x)
    return h_last @ w_lin.T + b_lin


if __name__ == "__main__":
    # Module defaults: input_size=1, hidden_layer_size=100, output_size=1.
    input_size, hidden, output_size = 1, 100, 1
    seq_len, batch = 8, 2

    key = jax.random.PRNGKey(0)
    ks = jax.random.split(key, 7)
    bound = 1.0 / jnp.sqrt(hidden)  # PyTorch default uniform init bound

    w_ih = jax.random.uniform(ks[0], (4 * hidden, input_size), jnp.float32, -bound, bound)
    w_hh = jax.random.uniform(ks[1], (4 * hidden, hidden), jnp.float32, -bound, bound)
    b_ih = jax.random.uniform(ks[2], (4 * hidden,), jnp.float32, -bound, bound)
    b_hh = jax.random.uniform(ks[3], (4 * hidden,), jnp.float32, -bound, bound)
    w_lin = jax.random.uniform(ks[4], (output_size, hidden), jnp.float32, -bound, bound)
    b_lin = jax.random.uniform(ks[5], (output_size,), jnp.float32, -bound, bound)

    x = jax.random.normal(ks[6], (seq_len, batch, input_size), jnp.float32)

    # One-time weight prep (outside the per-call path).
    params = jax.tree_util.tree_map(jax.block_until_ready,
                                    prepare_lstm_params(w_ih, w_hh, b_ih, b_hh,
                                                        w_lin, b_lin))

    fwd = jax.jit(lstm_forward)
    out = jax.block_until_ready(fwd(x, params))

    ref = _reference(x, w_ih, w_hh, b_ih, b_hh, w_lin, b_lin)
    assert out.shape == (batch, output_size)
    # bf16 MXU operands for the recurrent matmul -> tolerance loosened vs f32 ref.
    assert jnp.allclose(out, ref, atol=1e-2, rtol=1e-2), (out, ref)

    print("KERNEL_OK")
</pallas_src>

<mosaic_0001>
module attributes {stable_mosaic.version = 11 : i64} {
  func.func @_lstm_kernel(%arg0: memref<8x2x1xf32, #tpu.memory_space<vmem>>, %arg1: memref<1x512xf32, #tpu.memory_space<vmem>>, %arg2: memref<1x512xf32, #tpu.memory_space<vmem>>, %arg3: memref<128x512xbf16, #tpu.memory_space<vmem>>, %arg4: memref<1x128xf32, #tpu.memory_space<vmem>>, %arg5: memref<1x1xf32, #tpu.memory_space<vmem>>, %arg6: memref<2x1xf32, #tpu.memory_space<vmem>>) attributes {dimension_semantics = [], scalar_prefetch = 0 : i64, scratch_operands = 0 : i64, tpu.core_type = #tpu.core_type<tc>} {
    %cst = arith.constant 0.000000e+00 : f32
    %0 = vector.broadcast %cst : f32 to vector<2x128xf32>
    %cst_0 = arith.constant 0.000000e+00 : f32
    %1 = vector.broadcast %cst_0 : f32 to vector<2x128xf32>
    %c0_i32 = arith.constant 0 : i32
    %2 = arith.index_cast %c0_i32 : i32 to index
    %c0 = arith.constant 0 : index
    %c0_1 = arith.constant 0 : index
    %3 = vector.load %arg0[%2, %c0, %c0_1] : memref<8x2x1xf32, #tpu.memory_space<vmem>>, vector<1x2x1xf32>
    %4 = vector.shape_cast %3 : vector<1x2x1xf32> to vector<2x1xf32>
    %c0_2 = arith.constant 0 : index
    %c0_3 = arith.constant 0 : index
    %5 = vector.load %arg2[%c0_2, %c0_3] : memref<1x512xf32, #tpu.memory_space<vmem>>, vector<1x512xf32>
    %c0_4 = arith.constant 0 : index
    %c0_5 = arith.constant 0 : index
    %6 = vector.load %arg1[%c0_4, %c0_5] : memref<1x512xf32, #tpu.memory_space<vmem>>, vector<1x512xf32>
    %7 = vector.broadcast %4 : vector<2x1xf32> to vector<2x512xf32>
    %8 = vector.broadcast %6 : vector<1x512xf32> to vector<2x512xf32>
    %9 = arith.mulf %7, %8 : vector<2x512xf32>
    %10 = vector.broadcast %5 : vector<1x512xf32> to vector<2x512xf32>
    %11 = arith.addf %10, %9 : vector<2x512xf32>
    %12 = arith.truncf %0 : vector<2x128xf32> to vector<2x128xbf16>
    %c0_6 = arith.constant 0 : index
    %c0_7 = arith.constant 0 : index
    %13 = vector.load %arg3[%c0_6, %c0_7] : memref<128x512xbf16, #tpu.memory_space<vmem>>, vector<128x512xbf16>
    %cst_8 = arith.constant dense<0.000000e+00> : vector<2x512xf32>
    %14 = tpu.matmul %12, %13, %cst_8 {dimension_numbers = #tpu.dot_dimension_numbers<[1], [0], [0], [1], [0, 0, 1, 1], [], []>} : vector<2x128xbf16>, vector<128x512xbf16>, vector<2x512xf32> -> vector<2x512xf32>
    %15 = arith.addf %11, %14 : vector<2x512xf32>
    %16 = vector.extract_strided_slice %15 {offsets = [0, 0], sizes = [2, 384], strides = [1, 1]} : vector<2x512xf32> to vector<2x384xf32>
    %17 = arith.negf %16 : vector<2x384xf32>
    %18 = math.exp %17 : vector<2x384xf32>
    %cst_9 = arith.constant 1.000000e+00 : f32
    %19 = vector.broadcast %cst_9 : f32 to vector<2x384xf32>
    %20 = arith.addf %19, %18 : vector<2x384xf32>
    %21 = arith.divf %19, %20 : vector<2x384xf32>
    %22 = vector.extract_strided_slice %15 {offsets = [0, 384], sizes = [2, 128], strides = [1, 1]} : vector<2x512xf32> to vector<2x128xf32>
    %23 = math.tanh %22 : vector<2x128xf32>
    %24 = vector.extract_strided_slice %21 {offsets = [0, 0], sizes = [2, 128], strides = [1, 1]} : vector<2x384xf32> to vector<2x128xf32>
    %25 = vector.extract_strided_slice %21 {offsets = [0, 128], sizes = [2, 128], strides = [1, 1]} : vector<2x384xf32> to vector<2x128xf32>
    %26 = vector.extract_strided_slice %21 {offsets = [0, 256], sizes = [2, 128], strides = [1, 1]} : vector<2x384xf32> to vector<2x128xf32>
    %27 = arith.mulf %25, %1 : vector<2x128xf32>
    %28 = arith.mulf %24, %23 : vector<2x128xf32>
    %29 = arith.addf %27, %28 : vector<2x128xf32>
    %30 = math.tanh %29 : vector<2x128xf32>
    %31 = arith.mulf %26, %30 : vector<2x128xf32>
    %c1_i32 = arith.constant 1 : i32
    %32 = arith.index_cast %c1_i32 : i32 to index
    %c0_10 = arith.constant 0 : index
    %c0_11 = arith.constant 0 : index
    %33 = vector.load %arg0[%32, %c0_10, %c0_11] : memref<8x2x1xf32, #tpu.memory_space<vmem>>, vector<1x2x1xf32>
    %34 = vector.shape_cast %33 : vector<1x2x1xf32> to vector<2x1xf32>
    %c0_12 = arith.constant 0 : index
    %c0_13 = arith.constant 0 : index
    %35 = vector.load %arg2[%c0_12, %c0_13] : memref<1x512xf32, #tpu.memory_space<vmem>>, vector<1x512xf32>
    %c0_14 = arith.constant 0 : index
    %c0_15 = arith.constant 0 : index
    %36 = vector.load %arg1[%c0_14, %c0_15] : memref<1x512xf32, #tpu.memory_space<vmem>>, vector<1x512xf32>
    %37 = vector.broadcast %34 : vector<2x1xf32> to vector<2x512xf32>
    %38 = vector.broadcast %36 : vector<1x512xf32> to vector<2x512xf32>
    %39 = arith.mulf %37, %38 : vector<2x512xf32>
    %40 = vector.broadcast %35 : vector<1x512xf32> to vector<2x512xf32>
    %41 = arith.addf %40, %39 : vector<2x512xf32>
    %42 = arith.truncf %31 : vector<2x128xf32> to vector<2x128xbf16>
    %c0_16 = arith.constant 0 : index
    %c0_17 = arith.constant 0 : index
    %43 = vector.load %arg3[%c0_16, %c0_17] : memref<128x512xbf16, #tpu.memory_space<vmem>>, vector<128x512xbf16>
    %cst_18 = arith.constant dense<0.000000e+00> : vector<2x512xf32>
    %44 = tpu.matmul %42, %43, %cst_18 {dimension_numbers = #tpu.dot_dimension_numbers<[1], [0], [0], [1], [0, 0, 1, 1], [], []>} : vector<2x128xbf16>, vector<128x512xbf16>, vector<2x512xf32> -> vector<2x512xf32>
    %45 = arith.addf %41, %44 : vector<2x512xf32>
    %46 = vector.extract_strided_slice %45 {offsets = [0, 0], sizes = [2, 384], strides = [1, 1]} : vector<2x512xf32> to vector<2x384xf32>
    %47 = arith.negf %46 : vector<2x384xf32>
    %48 = math.exp %47 : vector<2x384xf32>
    %cst_19 = arith.constant 1.000000e+00 : f32
    %49 = vector.broadcast %cst_19 : f32 to vector<2x384xf32>
    %50 = arith.addf %49, %48 : vector<2x384xf32>
    %51 = arith.divf %49, %50 : vector<2x384xf32>
    %52 = vector.extract_strided_slice %45 {offsets = [0, 384], sizes = [2, 128], strides = [1, 1]} : vector<2x512xf32> to vector<2x128xf32>
    %53 = math.tanh %52 : vector<2x128xf32>
    %54 = vector.extract_strided_slice %51 {offsets = [0, 0], sizes = [2, 128], strides = [1, 1]} : vector<2x384xf32> to vector<2x128xf32>
    %55 = vector.extract_strided_slice %51 {offsets = [0, 128], sizes = [2, 128], strides = [1, 1]} : vector<2x384xf32> to vector<2x128xf32>
    %56 = vector.extract_strided_slice %51 {offsets = [0, 256], sizes = [2, 128], strides = [1, 1]} : vector<2x384xf32> to vector<2x128xf32>
    %57 = arith.mulf %55, %29 : vector<2x128xf32>
    %58 = arith.mulf %54, %53 : vector<2x128xf32>
    %59 = arith.addf %57, %58 : vector<2x128xf32>
    %60 = math.tanh %59 : vector<2x128xf32>
    %61 = arith.mulf %56, %60 : vector<2x128xf32>
    %c2_i32 = arith.constant 2 : i32
    %62 = arith.index_cast %c2_i32 : i32 to index
    %c0_20 = arith.constant 0 : index
    %c0_21 = arith.constant 0 : index
    %63 = vector.load %arg0[%62, %c0_20, %c0_21] : memref<8x2x1xf32, #tpu.memory_space<vmem>>, vector<1x2x1xf32>
    %64 = vector.shape_cast %63 : vector<1x2x1xf32> to vector<2x1xf32>
    %c0_22 = arith.constant 0 : index
    %c0_23 = arith.constant 0 : index
    %65 = vector.load %arg2[%c0_22, %c0_23] : memref<1x512xf32, #tpu.memory_space<vmem>>, vector<1x512xf32>
    %c0_24 = arith.constant 0 : index
    %c0_25 = arith.constant 0 : index
    %66 = vector.load %arg1[%c0_24, %c0_25] : memref<1x512xf32, #tpu.memory_space<vmem>>, vector<1x512xf32>
    %67 = vector.broadcast %64 : vector<2x1xf32> to vector<2x512xf32>
    %68 = vector.broadcast %66 : vector<1x512xf32> to vector<2x512xf32>
    %69 = arith.mulf %67, %68 : vector<2x512xf32>
    %70 = vector.broadcast %65 : vector<1x512xf32> to vector<2x512xf32>
    %71 = arith.addf %70, %69 : vector<2x512xf32>
    %72 = arith.truncf %61 : vector<2x128xf32> to vector<2x128xbf16>
    %c0_26 = arith.constant 0 : index
    %c0_27 = arith.constant 0 : index
    %73 = vector.load %arg3[%c0_26, %c0_27] : memref<128x512xbf16, #tpu.memory_space<vmem>>, vector<128x512xbf16>
    %cst_28 = arith.constant dense<0.000000e+00> : vector<2x512xf32>
    %74 = tpu.matmul %72, %73, %cst_28 {dimension_numbers = #tpu.dot_dimension_numbers<[1], [0], [0], [1], [0, 0, 1, 1], [], []>} : vector<2x128xbf16>, vector<128x512xbf16>, vector<2x512xf32> -> vector<2x512xf32>
    %75 = arith.addf %71, %74 : vector<2x512xf32>
    %76 = vector.extract_strided_slice %75 {offsets = [0, 0], sizes = [2, 384], strides = [1, 1]} : vector<2x512xf32> to vector<2x384xf32>
    %77 = arith.negf %76 : vector<2x384xf32>
    %78 = math.exp %77 : vector<2x384xf32>
    %cst_29 = arith.constant 1.000000e+00 : f32
    %79 = vector.broadcast %cst_29 : f32 to vector<2x384xf32>
    %80 = arith.addf %79, %78 : vector<2x384xf32>
    %81 = arith.divf %79, %80 : vector<2x384xf32>
    %82 = vector.extract_strided_slice %75 {offsets = [0, 384], sizes = [2, 128], strides = [1, 1]} : vector<2x512xf32> to vector<2x128xf32>
    %83 = math.tanh %82 : vector<2x128xf32>
    %84 = vector.extract_strided_slice %81 {offsets = [0, 0], sizes = [2, 128], strides = [1, 1]} : vector<2x384xf32> to vector<2x128xf32>
    %85 = vector.extract_strided_slice %81 {offsets = [0, 128], sizes = [2, 128], strides = [1, 1]} : vector<2x384xf32> to vector<2x128xf32>
    %86 = vector.extract_strided_slice %81 {offsets = [0, 256], sizes = [2, 128], strides = [1, 1]} : vector<2x384xf32> to vector<2x128xf32>
    %87 = arith.mulf %85, %59 : vector<2x128xf32>
    %88 = arith.mulf %84, %83 : vector<2x128xf32>
    %89 = arith.addf %87, %88 : vector<2x128xf32>
    %90 = math.tanh %89 : vector<2x128xf32>
    %91 = arith.mulf %86, %90 : vector<2x128xf32>
    %c3_i32 = arith.constant 3 : i32
    %92 = arith.index_cast %c3_i32 : i32 to index
    %c0_30 = arith.constant 0 : index
    %c0_31 = arith.constant 0 : index
    %93 = vector.load %arg0[%92, %c0_30, %c0_31] : memref<8x2x1xf32, #tpu.memory_space<vmem>>, vector<1x2x1xf32>
    %94 = vector.shape_cast %93 : vector<1x2x1xf32> to vector<2x1xf32>
    %c0_32 = arith.constant 0 : index
    %c0_33 = arith.constant 0 : index
    %95 = vector.load %arg2[%c0_32, %c0_33] : memref<1x512xf32, #tpu.memory_space<vmem>>, vector<1x512xf32>
    %c0_34 = arith.constant 0 : index
    %c0_35 = arith.constant 0 : index
    %96 = vector.load %arg1[%c0_34, %c0_35] : memref<1x512xf32, #tpu.memory_space<vmem>>, vector<1x512xf32>
    %97 = vector.broadcast %94 : vector<2x1xf32> to vector<2x512xf32>
    %98 = vector.broadcast %96 : vector<1x512xf32> to vector<2x512xf32>
    %99 = arith.mulf %97, %98 : vector<2x512xf32>
    %100 = vector.broadcast %95 : vector<1x512xf32> to vector<2x512xf32>
    %101 = arith.addf %100, %99 : vector<2x512xf32>
    %102 = arith.truncf %91 : vector<2x128xf32> to vector<2x128xbf16>
    %c0_36 = arith.constant 0 : index
    %c0_37 = arith.constant 0 : index
    %103 = vector.load %arg3[%c0_36, %c0_37] : memref<128x512xbf16, #tpu.memory_space<vmem>>, vector<128x512xbf16>
    %cst_38 = arith.constant dense<0.000000e+00> : vector<2x512xf32>
    %104 = tpu.matmul %102, %103, %cst_38 {dimension_numbers = #tpu.dot_dimension_numbers<[1], [0], [0], [1], [0, 0, 1, 1], [], []>} : vector<2x128xbf16>, vector<128x512xbf16>, vector<2x512xf32> -> vector<2x512xf32>
    %105 = arith.addf %101, %104 : vector<2x512xf32>
    %106 = vector.extract_strided_slice %105 {offsets = [0, 0], sizes = [2, 384], strides = [1, 1]} : vector<2x512xf32> to vector<2x384xf32>
    %107 = arith.negf %106 : vector<2x384xf32>
    %108 = math.exp %107 : vector<2x384xf32>
    %cst_39 = arith.constant 1.000000e+00 : f32
    %109 = vector.broadcast %cst_39 : f32 to vector<2x384xf32>
    %110 = arith.addf %109, %108 : vector<2x384xf32>
    %111 = arith.divf %109, %110 : vector<2x384xf32>
    %112 = vector.extract_strided_slice %105 {offsets = [0, 384], sizes = [2, 128], strides = [1, 1]} : vector<2x512xf32> to vector<2x128xf32>
    %113 = math.tanh %112 : vector<2x128xf32>
    %114 = vector.extract_strided_slice %111 {offsets = [0, 0], sizes = [2, 128], strides = [1, 1]} : vector<2x384xf32> to vector<2x128xf32>
    %115 = vector.extract_strided_slice %111 {offsets = [0, 128], sizes = [2, 128], strides = [1, 1]} : vector<2x384xf32> to vector<2x128xf32>
    %116 = vector.extract_strided_slice %111 {offsets = [0, 256], sizes = [2, 128], strides = [1, 1]} : vector<2x384xf32> to vector<2x128xf32>
    %117 = arith.mulf %115, %89 : vector<2x128xf32>
    %118 = arith.mulf %114, %113 : vector<2x128xf32>
    %119 = arith.addf %117, %118 : vector<2x128xf32>
    %120 = math.tanh %119 : vector<2x128xf32>
    %121 = arith.mulf %116, %120 : vector<2x128xf32>
    %c4_i32 = arith.constant 4 : i32
    %122 = arith.index_cast %c4_i32 : i32 to index
    %c0_40 = arith.constant 0 : index
    %c0_41 = arith.constant 0 : index
    %123 = vector.load %arg0[%122, %c0_40, %c0_41] : memref<8x2x1xf32, #tpu.memory_space<vmem>>, vector<1x2x1xf32>
    %124 = vector.shape_cast %123 : vector<1x2x1xf32> to vector<2x1xf32>
    %c0_42 = arith.constant 0 : index
    %c0_43 = arith.constant 0 : index
    %125 = vector.load %arg2[%c0_42, %c0_43] : memref<1x512xf32, #tpu.memory_space<vmem>>, vector<1x512xf32>
    %c0_44 = arith.constant 0 : index
    %c0_45 = arith.constant 0 : index
    %126 = vector.load %arg1[%c0_44, %c0_45] : memref<1x512xf32, #tpu.memory_space<vmem>>, vector<1x512xf32>
    %127 = vector.broadcast %124 : vector<2x1xf32> to vector<2x512xf32>
    %128 = vector.broadcast %126 : vector<1x512xf32> to vector<2x512xf32>
    %129 = arith.mulf %127, %128 : vector<2x512xf32>
    %130 = vector.broadcast %125 : vector<1x512xf32> to vector<2x512xf32>
    %131 = arith.addf %130, %129 : vector<2x512xf32>
    %132 = arith.truncf %121 : vector<2x128xf32> to vector<2x128xbf16>
    %c0_46 = arith.constant 0 : index
    %c0_47 = arith.constant 0 : index
    %133 = vector.load %arg3[%c0_46, %c0_47] : memref<128x512xbf16, #tpu.memory_space<vmem>>, vector<128x512xbf16>
    %cst_48 = arith.constant dense<0.000000e+00> : vector<2x512xf32>
    %134 = tpu.matmul %132, %133, %cst_48 {dimension_numbers = #tpu.dot_dimension_numbers<[1], [0], [0], [1], [0, 0, 1, 1], [], []>} : vector<2x128xbf16>, vector<128x512xbf16>, vector<2x512xf32> -> vector<2x512xf32>
    %135 = arith.addf %131, %134 : vector<2x512xf32>
    %136 = vector.extract_strided_slice %135 {offsets = [0, 0], sizes = [2, 384], strides = [1, 1]} : vector<2x512xf32> to vector<2x384xf32>
    %137 = arith.negf %136 : vector<2x384xf32>
    %138 = math.exp %137 : vector<2x384xf32>
    %cst_49 = arith.constant 1.000000e+00 : f32
    %139 = vector.broadcast %cst_49 : f32 to vector<2x384xf32>
    %140 = arith.addf %139, %138 : vector<2x384xf32>
    %141 = arith.divf %139, %140 : vector<2x384xf32>
    %142 = vector.extract_strided_slice %135 {offsets = [0, 384], sizes = [2, 128], strides = [1, 1]} : vector<2x512xf32> to vector<2x128xf32>
    %143 = math.tanh %142 : vector<2x128xf32>
    %144 = vector.extract_strided_slice %141 {offsets = [0, 0], sizes = [2, 128], strides = [1, 1]} : vector<2x384xf32> to vector<2x128xf32>
    %145 = vector.extract_strided_slice %141 {offsets = [0, 128], sizes = [2, 128], strides = [1, 1]} : vector<2x384xf32> to vector<2x128xf32>
    %146 = vector.extract_strided_slice %141 {offsets = [0, 256], sizes = [2, 128], strides = [1, 1]} : vector<2x384xf32> to vector<2x128xf32>
    %147 = arith.mulf %145, %119 : vector<2x128xf32>
    %148 = arith.mulf %144, %143 : vector<2x128xf32>
    %149 = arith.addf %147, %148 : vector<2x128xf32>
    %150 = math.tanh %149 : vector<2x128xf32>
    %151 = arith.mulf %146, %150 : vector<2x128xf32>
    %c5_i32 = arith.constant 5 : i32
    %152 = arith.index_cast %c5_i32 : i32 to index
    %c0_50 = arith.constant 0 : index
    %c0_51 = arith.constant 0 : index
    %153 = vector.load %arg0[%152, %c0_50, %c0_51] : memref<8x2x1xf32, #tpu.memory_space<vmem>>, vector<1x2x1xf32>
    %154 = vector.shape_cast %153 : vector<1x2x1xf32> to vector<2x1xf32>
    %c0_52 = arith.constant 0 : index
    %c0_53 = arith.constant 0 : index
    %155 = vector.load %arg2[%c0_52, %c0_53] : memref<1x512xf32, #tpu.memory_space<vmem>>, vector<1x512xf32>
    %c0_54 = arith.constant 0 : index
    %c0_55 = arith.constant 0 : index
    %156 = vector.load %arg1[%c0_54, %c0_55] : memref<1x512xf32, #tpu.memory_space<vmem>>, vector<1x512xf32>
    %157 = vector.broadcast %154 : vector<2x1xf32> to vector<2x512xf32>
    %158 = vector.broadcast %156 : vector<1x512xf32> to vector<2x512xf32>
    %159 = arith.mulf %157, %158 : vector<2x512xf32>
    %160 = vector.broadcast %155 : vector<1x512xf32> to vector<2x512xf32>
    %161 = arith.addf %160, %159 : vector<2x512xf32>
    %162 = arith.truncf %151 : vector<2x128xf32> to vector<2x128xbf16>
    %c0_56 = arith.constant 0 : index
    %c0_57 = arith.constant 0 : index
    %163 = vector.load %arg3[%c0_56, %c0_57] : memref<128x512xbf16, #tpu.memory_space<vmem>>, vector<128x512xbf16>
    %cst_58 = arith.constant dense<0.000000e+00> : vector<2x512xf32>
    %164 = tpu.matmul %162, %163, %cst_58 {dimension_numbers = #tpu.dot_dimension_numbers<[1], [0], [0], [1], [0, 0, 1, 1], [], []>} : vector<2x128xbf16>, vector<128x512xbf16>, vector<2x512xf32> -> vector<2x512xf32>
    %165 = arith.addf %161, %164 : vector<2x512xf32>
    %166 = vector.extract_strided_slice %165 {offsets = [0, 0], sizes = [2, 384], strides = [1, 1]} : vector<2x512xf32> to vector<2x384xf32>
    %167 = arith.negf %166 : vector<2x384xf32>
    %168 = math.exp %167 : vector<2x384xf32>
    %cst_59 = arith.constant 1.000000e+00 : f32
    %169 = vector.broadcast %cst_59 : f32 to vector<2x384xf32>
    %170 = arith.addf %169, %168 : vector<2x384xf32>
    %171 = arith.divf %169, %170 : vector<2x384xf32>
    %172 = vector.extract_strided_slice %165 {offsets = [0, 384], sizes = [2, 128], strides = [1, 1]} : vector<2x512xf32> to vector<2x128xf32>
    %173 = math.tanh %172 : vector<2x128xf32>
    %174 = vector.extract_strided_slice %171 {offsets = [0, 0], sizes = [2, 128], strides = [1, 1]} : vector<2x384xf32> to vector<2x128xf32>
    %175 = vector.extract_strided_slice %171 {offsets = [0, 128], sizes = [2, 128], strides = [1, 1]} : vector<2x384xf32> to vector<2x128xf32>
    %176 = vector.extract_strided_slice %171 {offsets = [0, 256], sizes = [2, 128], strides = [1, 1]} : vector<2x384xf32> to vector<2x128xf32>
    %177 = arith.mulf %175, %149 : vector<2x128xf32>
    %178 = arith.mulf %174, %173 : vector<2x128xf32>
    %179 = arith.addf %177, %178 : vector<2x128xf32>
    %180 = math.tanh %179 : vector<2x128xf32>
    %181 = arith.mulf %176, %180 : vector<2x128xf32>
    %c6_i32 = arith.constant 6 : i32
    %182 = arith.index_cast %c6_i32 : i32 to index
    %c0_60 = arith.constant 0 : index
    %c0_61 = arith.constant 0 : index
    %183 = vector.load %arg0[%182, %c0_60, %c0_61] : memref<8x2x1xf32, #tpu.memory_space<vmem>>, vector<1x2x1xf32>
    %184 = vector.shape_cast %183 : vector<1x2x1xf32> to vector<2x1xf32>
    %c0_62 = arith.constant 0 : index
    %c0_63 = arith.constant 0 : index
    %185 = vector.load %arg2[%c0_62, %c0_63] : memref<1x512xf32, #tpu.memory_space<vmem>>, vector<1x512xf32>
    %c0_64 = arith.constant 0 : index
    %c0_65 = arith.constant 0 : index
    %186 = vector.load %arg1[%c0_64, %c0_65] : memref<1x512xf32, #tpu.memory_space<vmem>>, vector<1x512xf32>
    %187 = vector.broadcast %184 : vector<2x1xf32> to vector<2x512xf32>
    %188 = vector.broadcast %186 : vector<1x512xf32> to vector<2x512xf32>
    %189 = arith.mulf %187, %188 : vector<2x512xf32>
    %190 = vector.broadcast %185 : vector<1x512xf32> to vector<2x512xf32>
    %191 = arith.addf %190, %189 : vector<2x512xf32>
    %192 = arith.truncf %181 : vector<2x128xf32> to vector<2x128xbf16>
    %c0_66 = arith.constant 0 : index
    %c0_67 = arith.constant 0 : index
    %193 = vector.load %arg3[%c0_66, %c0_67] : memref<128x512xbf16, #tpu.memory_space<vmem>>, vector<128x512xbf16>
    %cst_68 = arith.constant dense<0.000000e+00> : vector<2x512xf32>
    %194 = tpu.matmul %192, %193, %cst_68 {dimension_numbers = #tpu.dot_dimension_numbers<[1], [0], [0], [1], [0, 0, 1, 1], [], []>} : vector<2x128xbf16>, vector<128x512xbf16>, vector<2x512xf32> -> vector<2x512xf32>
    %195 = arith.addf %191, %194 : vector<2x512xf32>
    %196 = vector.extract_strided_slice %195 {offsets = [0, 0], sizes = [2, 384], strides = [1, 1]} : vector<2x512xf32> to vector<2x384xf32>
    %197 = arith.negf %196 : vector<2x384xf32>
    %198 = math.exp %197 : vector<2x384xf32>
    %cst_69 = arith.constant 1.000000e+00 : f32
    %199 = vector.broadcast %cst_69 : f32 to vector<2x384xf32>
    %200 = arith.addf %199, %198 : vector<2x384xf32>
    %201 = arith.divf %199, %200 : vector<2x384xf32>
    %202 = vector.extract_strided_slice %195 {offsets = [0, 384], sizes = [2, 128], strides = [1, 1]} : vector<2x512xf32> to vector<2x128xf32>
    %203 = math.tanh %202 : vector<2x128xf32>
    %204 = vector.extract_strided_slice %201 {offsets = [0, 0], sizes = [2, 128], strides = [1, 1]} : vector<2x384xf32> to vector<2x128xf32>
    %205 = vector.extract_strided_slice %201 {offsets = [0, 128], sizes = [2, 128], strides = [1, 1]} : vector<2x384xf32> to vector<2x128xf32>
    %206 = vector.extract_strided_slice %201 {offsets = [0, 256], sizes = [2, 128], strides = [1, 1]} : vector<2x384xf32> to vector<2x128xf32>
    %207 = arith.mulf %205, %179 : vector<2x128xf32>
    %208 = arith.mulf %204, %203 : vector<2x128xf32>
    %209 = arith.addf %207, %208 : vector<2x128xf32>
    %210 = math.tanh %209 : vector<2x128xf32>
    %211 = arith.mulf %206, %210 : vector<2x128xf32>
    %c7_i32 = arith.constant 7 : i32
    %212 = arith.index_cast %c7_i32 : i32 to index
    %c0_70 = arith.constant 0 : index
    %c0_71 = arith.constant 0 : index
    %213 = vector.load %arg0[%212, %c0_70, %c0_71] : memref<8x2x1xf32, #tpu.memory_space<vmem>>, vector<1x2x1xf32>
    %214 = vector.shape_cast %213 : vector<1x2x1xf32> to vector<2x1xf32>
    %c0_72 = arith.constant 0 : index
    %c0_73 = arith.constant 0 : index
    %215 = vector.load %arg2[%c0_72, %c0_73] : memref<1x512xf32, #tpu.memory_space<vmem>>, vector<1x512xf32>
    %c0_74 = arith.constant 0 : index
    %c0_75 = arith.constant 0 : index
    %216 = vector.load %arg1[%c0_74, %c0_75] : memref<1x512xf32, #tpu.memory_space<vmem>>, vector<1x512xf32>
    %217 = vector.broadcast %214 : vector<2x1xf32> to vector<2x512xf32>
    %218 = vector.broadcast %216 : vector<1x512xf32> to vector<2x512xf32>
    %219 = arith.mulf %217, %218 : vector<2x512xf32>
    %220 = vector.broadcast %215 : vector<1x512xf32> to vector<2x512xf32>
    %221 = arith.addf %220, %219 : vector<2x512xf32>
    %222 = arith.truncf %211 : vector<2x128xf32> to vector<2x128xbf16>
    %c0_76 = arith.constant 0 : index
    %c0_77 = arith.constant 0 : index
    %223 = vector.load %arg3[%c0_76, %c0_77] : memref<128x512xbf16, #tpu.memory_space<vmem>>, vector<128x512xbf16>
    %cst_78 = arith.constant dense<0.000000e+00> : vector<2x512xf32>
    %224 = tpu.matmul %222, %223, %cst_78 {dimension_numbers = #tpu.dot_dimension_numbers<[1], [0], [0], [1], [0, 0, 1, 1], [], []>} : vector<2x128xbf16>, vector<128x512xbf16>, vector<2x512xf32> -> vector<2x512xf32>
    %225 = arith.addf %221, %224 : vector<2x512xf32>
    %226 = vector.extract_strided_slice %225 {offsets = [0, 0], sizes = [2, 384], strides = [1, 1]} : vector<2x512xf32> to vector<2x384xf32>
    %227 = arith.negf %226 : vector<2x384xf32>
    %228 = math.exp %227 : vector<2x384xf32>
    %cst_79 = arith.constant 1.000000e+00 : f32
    %229 = vector.broadcast %cst_79 : f32 to vector<2x384xf32>
    %230 = arith.addf %229, %228 : vector<2x384xf32>
    %231 = arith.divf %229, %230 : vector<2x384xf32>
    %232 = vector.extract_strided_slice %225 {offsets = [0, 384], sizes = [2, 128], strides = [1, 1]} : vector<2x512xf32> to vector<2x128xf32>
    %233 = math.tanh %232 : vector<2x128xf32>
    %234 = vector.extract_strided_slice %231 {offsets = [0, 0], sizes = [2, 128], strides = [1, 1]} : vector<2x384xf32> to vector<2x128xf32>
    %235 = vector.extract_strided_slice %231 {offsets = [0, 128], sizes = [2, 128], strides = [1, 1]} : vector<2x384xf32> to vector<2x128xf32>
    %236 = vector.extract_strided_slice %231 {offsets = [0, 256], sizes = [2, 128], strides = [1, 1]} : vector<2x384xf32> to vector<2x128xf32>
    %237 = arith.mulf %235, %209 : vector<2x128xf32>
    %238 = arith.mulf %234, %233 : vector<2x128xf32>
    %239 = arith.addf %237, %238 : vector<2x128xf32>
    %240 = math.tanh %239 : vector<2x128xf32>
    %241 = arith.mulf %236, %240 : vector<2x128xf32>
    %c8_i32 = arith.constant 8 : i32
    %c0_80 = arith.constant 0 : index
    %c0_81 = arith.constant 0 : index
    %242 = vector.load %arg4[%c0_80, %c0_81] : memref<1x128xf32, #tpu.memory_space<vmem>>, vector<1x128xf32>
    %243 = vector.broadcast %242 : vector<1x128xf32> to vector<2x128xf32>
    %244 = arith.mulf %241, %243 : vector<2x128xf32>
    %cst_82 = arith.constant dense<0.000000e+00> : vector<2xf32>
    %245 = vector.multi_reduction <add>, %244, %cst_82 [1] : vector<2x128xf32> to vector<2xf32>
    %246 = vector.shape_cast %245 : vector<2xf32> to vector<2x1xf32>
    %c0_83 = arith.constant 0 : index
    %c0_84 = arith.constant 0 : index
    %247 = vector.load %arg5[%c0_83, %c0_84] : memref<1x1xf32, #tpu.memory_space<vmem>>, vector<1x1xf32>
    %248 = vector.broadcast %247 : vector<1x1xf32> to vector<2x1xf32>
    %249 = arith.addf %246, %248 : vector<2x1xf32>
    %c0_85 = arith.constant 0 : index
    %c0_86 = arith.constant 0 : index
    %250 = vector.load %arg6[%c0_85, %c0_86] : memref<2x1xf32, #tpu.memory_space<vmem>>, vector<2x1xf32>
    tpu.vector_store %arg6[%c0_85, %c0_86], %249 {strides = array<i32>} : memref<2x1xf32, #tpu.memory_space<vmem>>, vector<2x1xf32>,
    return
  }
}

</mosaic_0001>

<llo_original>
// kernel: lstm_forward.1
$region0: #{lstm_forward.1}
  #allocation0 [shape = 'u32[]', space=smem, size = 0x4, offset = 0x4, fixed_abs, tag = 'smem constant byte address 0x4 - core index']
  #allocation1 [shape = 'u32[144,128]{1,0:T(1,128)}', space=vmem, size = 0x12000, scoped, tag = 'internal scratch']
  #allocation2 [shape = 'f32[1,1]{1,0:T(1,128)S(1)}', space=vmem, size = 0x200, scoped, tag = 'scoped memory for lstm_forward.1']
  %s0 = inlined_call_operand.vmem [shape: f32[8,2,1], index: 0, kind: input, shape index: {}]
  %s1 = inlined_call_operand.vmem [shape: f32[1,512], index: 1, kind: input, shape index: {}]
  %s2 = inlined_call_operand.vmem [shape: f32[1,512], index: 2, kind: input, shape index: {}]
  %s3 = inlined_call_operand.hbm [shape: bf16[128,512], index: 3, kind: input, shape index: {}]
  %s4 = inlined_call_operand.vmem [shape: f32[1,128], index: 4, kind: input, shape index: {}]
  %s5 = inlined_call_operand.<no memory space> [shape: f32[1,1], index: 5, kind: input, shape index: {}]
  %s6 = inlined_call_operand.vmem [shape: f32[2,1], index: 6, kind: output, shape index: {}]
  %s7 = sld [smem:[#allocation0]]
  $region38: #{lstm_forward.1} parent=0
    _
  %s9 = ssub.s32 1, %s7
  %s10 = scalar_select 0, %s9, %s7
  %v11 = vstv %s5
  %12 = vst [vmem:[#allocation2] sm:$0x1] %v11
  $region1: #{lstm_forward.1} parent=0
    #allocation3 [shape = 'u8[131072]{0}', space=vmem, size = 0x20000, scoped, tag = 'input window, operand 3, single buffered']
    #allocation4 [shape = 's32[1]{0}', space=sflag, size = 0x4, scoped, tag = 'scoped memory for lstm_forward.1']
    %13 = vsyncpa [#allocation4], 0
    // Predicated region
    $region2: #{lstm_forward.1} parent=1 // pred_check
      _
    $region3: #{lstm_forward.1} parent=1 // pred_check_branch
      %15 = sbr.rel (0) target = $region5
    $region4: #{lstm_forward.1} parent=1 // pred_region
      _
    $region5: #{lstm_forward.1} parent=1 // pred_fallthru
      _
    // Predicated region
    $region6: #{lstm_forward.1} parent=1 // pred_check
      _
    $region7: #{lstm_forward.1} parent=1 // pred_check_branch
      %17 = sbr.rel (0) target = $region9
    $region8: #{lstm_forward.1} parent=1 // pred_region
      _
    $region9: #{lstm_forward.1} parent=1 // pred_fallthru
      _
    // Predicated region
    $region10: #{lstm_forward.1} parent=1 // pred_check
      _
    $region11: #{lstm_forward.1} parent=1 // pred_check_branch
      %19 = sbr.rel (0) target = $region13
    $region12: #{lstm_forward.1} parent=1 // pred_region
      _
    $region13: #{lstm_forward.1} parent=1 // pred_fallthru
      _
    // Predicated region
    $region14: #{lstm_forward.1} parent=1 // pred_check
      _
    $region15: #{lstm_forward.1} parent=1 // pred_check_branch
      %21 = sbr.rel (0) target = $region17
    $region16: #{lstm_forward.1} parent=1 // pred_region
      %s23 = ssub.s32 4096, 4096
      %24 = vsyncadd [#allocation4], %s23
      %s25 = sshll.u32 [#allocation3], 4
      %s26 = int_to_ptr.vmem [resolvable:$true] %s25
      %31 = dma.hbm_to_vmem [thread:$0]  %s3, 4096, %s26, [#allocation4], 256, 256, 16
    $region17: #{lstm_forward.1} parent=1 // pred_fallthru
      _
    // Predicated region
    $region18: #{lstm_forward.1} parent=1 // pred_check
      _
    $region19: #{lstm_forward.1} parent=1 // pred_check_branch
      %33 = sbr.rel (0) target = $region21
    $region20: #{lstm_forward.1} parent=1 // pred_region
      _
    $region21: #{lstm_forward.1} parent=1 // pred_fallthru
      _
    // Predicated region
    $region22: #{lstm_forward.1} parent=1 // pred_check
      _
    $region23: #{lstm_forward.1} parent=1 // pred_check_branch
      %35 = sbr.rel (0) target = $region25
    $region24: #{lstm_forward.1} parent=1 // pred_region
      _
    $region25: #{lstm_forward.1} parent=1 // pred_fallthru
      _
    // Predicated region
    $region26: #{lstm_forward.1} parent=1 // pred_check
      _
    $region27: #{lstm_forward.1} parent=1 // pred_check_branch
      %37 = sbr.rel (0) target = $region29
    $region28: #{lstm_forward.1} parent=1 // pred_region
      %38 = dma.done [#allocation4], 4096
    $region29: #{lstm_forward.1} parent=1 // pred_fallthru
      _
    %v40 = vld [vmem:[%s0] sm:$0x3]
    %v41 = vld [vmem:[%s2] sm:$0xf]
    %v42 = vld [vmem:[%s1] sm:$0xf]
    %44 = vset.pattern.permute.xlu0 0
    %45 = vperm.xlu0 %44, %v40
    %v46 = vpop.permute.xlu0 %45
    %v49 = vlaneseq
    %v50 = vshrl.u32 %v49, 7
    %v51 = vsub.s32 0, %v50
    %v52 = vrot.slane %v42, %v51
    %v53 = vlaneseq
    %v54 = vshrl.u32 %v53, 7
    %v55 = vsub.s32 1, %v54
    %v56 = vrot.slane %v42, %v55
    %v57 = vlaneseq
    %v58 = vshrl.u32 %v57, 7
    %v59 = vsub.s32 2, %v58
    %v60 = vrot.slane %v42, %v59
    %v61 = vlaneseq
    %v62 = vshrl.u32 %v61, 7
    %v63 = vsub.s32 3, %v62
    %v64 = vrot.slane %v42, %v63
    %v69 = vmul.f32 %v46, %v52
    %v70 = vmul.f32 %v46, %v56
    %v71 = vmul.f32 %v46, %v60
    %v72 = vmul.f32 %v46, %v64
    %v74 = vlaneseq
    %v75 = vshrl.u32 %v74, 7
    %v76 = vsub.s32 0, %v75
    %v77 = vrot.slane %v41, %v76
    %v78 = vlaneseq
    %v79 = vshrl.u32 %v78, 7
    %v80 = vsub.s32 1, %v79
    %v81 = vrot.slane %v41, %v80
    %v82 = vlaneseq
    %v83 = vshrl.u32 %v82, 7
    %v84 = vsub.s32 2, %v83
    %v85 = vrot.slane %v41, %v84
    %v86 = vlaneseq
    %v87 = vshrl.u32 %v86, 7
    %v88 = vsub.s32 3, %v87
    %v89 = vrot.slane %v41, %v88
    %v94 = vadd.f32 %v77, %v69
    %v95 = vadd.f32 %v81, %v70
    %v96 = vadd.f32 %v85, %v71
    %v97 = vadd.f32 %v89, %v72
    %v98 = vld [vmem:[#allocation3] sm:$0xff]
    %v99 = vld [vmem:[#allocation3 + $0x8] sm:$0xff]
    %v100 = vld [vmem:[#allocation3 + $0x10] sm:$0xff]
    %v101 = vld [vmem:[#allocation3 + $0x18] sm:$0xff]
    %v102 = vld [vmem:[#allocation3 + $0x20] sm:$0xff]
    %v103 = vld [vmem:[#allocation3 + $0x28] sm:$0xff]
    %v104 = vld [vmem:[#allocation3 + $0x30] sm:$0xff]
    %v105 = vld [vmem:[#allocation3 + $0x38] sm:$0xff]
    %v106 = vld [vmem:[#allocation3 + $0x40] sm:$0xff]
    %v107 = vld [vmem:[#allocation3 + $0x48] sm:$0xff]
    %v108 = vld [vmem:[#allocation3 + $0x50] sm:$0xff]
    %v109 = vld [vmem:[#allocation3 + $0x58] sm:$0xff]
    %v110 = vld [vmem:[#allocation3 + $0x60] sm:$0xff]
    %v111 = vld [vmem:[#allocation3 + $0x68] sm:$0xff]
    %v112 = vld [vmem:[#allocation3 + $0x70] sm:$0xff]
    %v113 = vld [vmem:[#allocation3 + $0x78] sm:$0xff]
    %v114 = vld [vmem:[#allocation3 + $0x80] sm:$0xff]
    %v115 = vld [vmem:[#allocation3 + $0x88] sm:$0xff]
    %v116 = vld [vmem:[#allocation3 + $0x90] sm:$0xff]
    %v117 = vld [vmem:[#allocation3 + $0x98] sm:$0xff]
    %v118 = vld [vmem:[#allocation3 + $0xa0] sm:$0xff]
    %v119 = vld [vmem:[#allocation3 + $0xa8] sm:$0xff]
    %v120 = vld [vmem:[#allocation3 + $0xb0] sm:$0xff]
    %v121 = vld [vmem:[#allocation3 + $0xb8] sm:$0xff]
    %v122 = vld [vmem:[#allocation3 + $0xc0] sm:$0xff]
    %v123 = vld [vmem:[#allocation3 + $0xc8] sm:$0xff]
    %v124 = vld [vmem:[#allocation3 + $0xd0] sm:$0xff]
    %v125 = vld [vmem:[#allocation3 + $0xd8] sm:$0xff]
    %v126 = vld [vmem:[#allocation3 + $0xe0] sm:$0xff]
    %v127 = vld [vmem:[#allocation3 + $0xe8] sm:$0xff]
    %v128 = vld [vmem:[#allocation3 + $0xf0] sm:$0xff]
    %v129 = vld [vmem:[#allocation3 + $0xf8] sm:$0xff]
    %v162 = vunpack.c.l.b16 %v98
    %v163 = vunpack.c.h.b16 %v98
    %v164 = vunpack.c.l.b16 %v99
    %v165 = vunpack.c.h.b16 %v99
    %v166 = vunpack.c.l.b16 %v100
    %v167 = vunpack.c.h.b16 %v100
    %v168 = vunpack.c.l.b16 %v101
    %v169 = vunpack.c.h.b16 %v101
    %v170 = vunpack.c.l.b16 %v102
    %v171 = vunpack.c.h.b16 %v102
    %v172 = vunpack.c.l.b16 %v103
    %v173 = vunpack.c.h.b16 %v103
    %v174 = vunpack.c.l.b16 %v104
    %v175 = vunpack.c.h.b16 %v104
    %v176 = vunpack.c.l.b16 %v105
    %v177 = vunpack.c.h.b16 %v105
    %v178 = vunpack.c.l.b16 %v106
    %v179 = vunpack.c.h.b16 %v106
    %v180 = vunpack.c.l.b16 %v107
    %v181 = vunpack.c.h.b16 %v107
    %v182 = vunpack.c.l.b16 %v108
    %v183 = vunpack.c.h.b16 %v108
    %v184 = vunpack.c.l.b16 %v109
    %v185 = vunpack.c.h.b16 %v109
    %v186 = vunpack.c.l.b16 %v110
    %v187 = vunpack.c.h.b16 %v110
    %v188 = vunpack.c.l.b16 %v111
    %v189 = vunpack.c.h.b16 %v111
    %v190 = vunpack.c.l.b16 %v112
    %v191 = vunpack.c.h.b16 %v112
    %v192 = vunpack.c.l.b16 %v113
    %v193 = vunpack.c.h.b16 %v113
    %v194 = vunpack.c.l.b16 %v114
    %v195 = vunpack.c.h.b16 %v114
    %v196 = vunpack.c.l.b16 %v115
    %v197 = vunpack.c.h.b16 %v115
    %v198 = vunpack.c.l.b16 %v116
    %v199 = vunpack.c.h.b16 %v116
    %v200 = vunpack.c.l.b16 %v117
    %v201 = vunpack.c.h.b16 %v117
    %v202 = vunpack.c.l.b16 %v118
    %v203 = vunpack.c.h.b16 %v118
    %v204 = vunpack.c.l.b16 %v119
    %v205 = vunpack.c.h.b16 %v119
    %v206 = vunpack.c.l.b16 %v120
    %v207 = vunpack.c.h.b16 %v120
    %v208 = vunpack.c.l.b16 %v121
    %v209 = vunpack.c.h.b16 %v121
    %v210 = vunpack.c.l.b16 %v122
    %v211 = vunpack.c.h.b16 %v122
    %v212 = vunpack.c.l.b16 %v123
    %v213 = vunpack.c.h.b16 %v123
    %v214 = vunpack.c.l.b16 %v124
    %v215 = vunpack.c.h.b16 %v124
    %v216 = vunpack.c.l.b16 %v125
    %v217 = vunpack.c.h.b16 %v125
    %v218 = vunpack.c.l.b16 %v126
    %v219 = vunpack.c.h.b16 %v126
    %v220 = vunpack.c.l.b16 %v127
    %v221 = vunpack.c.h.b16 %v127
    %v222 = vunpack.c.l.b16 %v128
    %v223 = vunpack.c.h.b16 %v128
    %v224 = vunpack.c.l.b16 %v129
    %v225 = vunpack.c.h.b16 %v129
    %v226 = vpack.c.b16 %v166, %v162
    %v227 = vpack.c.b16 %v167, %v163
    %v228 = vpack.c.b16 %v168, %v164
    %v229 = vpack.c.b16 %v169, %v165
    %v230 = vpack.c.b16 %v174, %v170
    %v231 = vpack.c.b16 %v175, %v171
    %v232 = vpack.c.b16 %v176, %v172
    %v233 = vpack.c.b16 %v177, %v173
    %v234 = vpack.c.b16 %v182, %v178
    %v235 = vpack.c.b16 %v183, %v179
    %v236 = vpack.c.b16 %v184, %v180
    %v237 = vpack.c.b16 %v185, %v181
    %v238 = vpack.c.b16 %v190, %v186
    %v239 = vpack.c.b16 %v191, %v187
    %v240 = vpack.c.b16 %v192, %v188
    %v241 = vpack.c.b16 %v193, %v189
    %v242 = vpack.c.b16 %v198, %v194
    %v243 = vpack.c.b16 %v199, %v195
    %v244 = vpack.c.b16 %v200, %v196
    %v245 = vpack.c.b16 %v201, %v197
    %v246 = vpack.c.b16 %v206, %v202
    %v247 = vpack.c.b16 %v207, %v203
    %v248 = vpack.c.b16 %v208, %v204
    %v249 = vpack.c.b16 %v209, %v205
    %v250 = vpack.c.b16 %v214, %v210
    %v251 = vpack.c.b16 %v215, %v211
    %v252 = vpack.c.b16 %v216, %v212
    %v253 = vpack.c.b16 %v217, %v213
    %v254 = vpack.c.b16 %v222, %v218
    %v255 = vpack.c.b16 %v223, %v219
    %v256 = vpack.c.b16 %v224, %v220
    %v257 = vpack.c.b16 %v225, %v221
    %290 = vmatprep.subr.bf16.mxu0 %v227
    %291 = vmatpush1.bf16.msra.mxu0 %v226
    %292 = vmatprep.subr.bf16.mxu0 %v231
    %293 = vmatpush1.bf16.msra.mxu0 %v230
    %294 = vmatprep.subr.bf16.mxu0 %v235
    %295 = vmatpush1.bf16.msra.mxu0 %v234
    %296 = vmatprep.subr.bf16.mxu0 %v239
    %297 = vmatpush1.bf16.msra.mxu0 %v238
    %298 = vmatprep.subr.bf16.mxu0 %v243
    %299 = vmatpush1.bf16.msra.mxu0 %v242
    %300 = vmatprep.subr.bf16.mxu0 %v247
    %301 = vmatpush1.bf16.msra.mxu0 %v246
    %302 = vmatprep.subr.bf16.mxu0 %v251
    %303 = vmatpush1.bf16.msra.mxu0 %v250
    %304 = vmatprep.subr.bf16.mxu0 %v255
    %305 = vmatpush1.bf16.msra.mxu0 %v254
    %306 = vmatprep.subr.bf16.mxu0 0
    %307 = vmatpush1.bf16.msra.mxu0 0
    %308 = vmatprep.subr.bf16.mxu0 0
    %309 = vmatpush1.bf16.msra.mxu0 0
    %310 = vmatprep.subr.bf16.mxu0 0
    %311 = vmatpush1.bf16.msra.mxu0 0
    %312 = vmatprep.subr.bf16.mxu0 0
    %313 = vmatpush1.bf16.msra.mxu0 0
    %314 = vmatprep.subr.bf16.mxu0 0
    %315 = vmatpush1.bf16.msra.mxu0 0
    %316 = vmatprep.subr.bf16.mxu0 0
    %317 = vmatpush1.bf16.msra.mxu0 0
    %318 = vmatprep.subr.bf16.mxu0 0
    %319 = vmatpush1.bf16.msra.mxu0 0
    %320 = vmatprep.subr.bf16.mxu0 0
    %321 = vmatpush1.bf16.msra.mxu0 0
    %322 = vmatprep.mubr.bf16.mxu0 0
    %323 = vmatmul.mubr.bf16.gmra.mrb[0].mxu0 0
    %v324 = vpop.f32.mrb[0].mxu0
    %v325 = vadd.f32 0.0, %v324
    %v326 = vpop.f32.mrb[0].mxu0
    %v327 = vadd.f32 0.0, %v326
    %v328 = vpop.f32.mrb[0].mxu0
    %v329 = vpop.f32.mrb[0].mxu0
    %330 = vdwg.mxu0
    %331 = vmatprep.subr.bf16.mxu0 %v229
    %332 = vmatpush1.bf16.msra.mxu0 %v228
    %333 = vmatprep.subr.bf16.mxu0 %v233
    %334 = vmatpush1.bf16.msra.mxu0 %v232
    %335 = vmatprep.subr.bf16.mxu0 %v237
    %336 = vmatpush1.bf16.msra.mxu0 %v236
    %337 = vmatprep.subr.bf16.mxu0 %v241
    %338 = vmatpush1.bf16.msra.mxu0 %v240
    %339 = vmatprep.subr.bf16.mxu0 %v245
    %340 = vmatpush1.bf16.msra.mxu0 %v244
    %341 = vmatprep.subr.bf16.mxu0 %v249
    %342 = vmatpush1.bf16.msra.mxu0 %v248
    %343 = vmatprep.subr.bf16.mxu0 %v253
    %344 = vmatpush1.bf16.msra.mxu0 %v252
    %345 = vmatprep.subr.bf16.mxu0 %v257
    %346 = vmatpush1.bf16.msra.mxu0 %v256
    %347 = vmatprep.subr.bf16.mxu0 0
    %348 = vmatpush1.bf16.msra.mxu0 0
    %349 = vmatprep.subr.bf16.mxu0 0
    %350 = vmatpush1.bf16.msra.mxu0 0
    %351 = vmatprep.subr.bf16.mxu0 0
    %352 = vmatpush1.bf16.msra.mxu0 0
    %353 = vmatprep.subr.bf16.mxu0 0
    %354 = vmatpush1.bf16.msra.mxu0 0
    %355 = vmatprep.subr.bf16.mxu0 0
    %356 = vmatpush1.bf16.msra.mxu0 0
    %357 = vmatprep.subr.bf16.mxu0 0
    %358 = vmatpush1.bf16.msra.mxu0 0
    %359 = vmatprep.subr.bf16.mxu0 0
    %360 = vmatpush1.bf16.msra.mxu0 0
    %361 = vmatprep.subr.bf16.mxu0 0
    %362 = vmatpush1.bf16.msra.mxu0 0
    %363 = vmatprep.mubr.bf16.mxu0 0
    %364 = vmatmul.mubr.bf16.gmra.mrb[0].mxu0 0
    %v365 = vpop.f32.mrb[0].mxu0
    %v366 = vadd.f32 0.0, %v365
    %v367 = vpop.f32.mrb[0].mxu0
    %v368 = vadd.f32 0.0, %v367
    %v369 = vpop.f32.mrb[0].mxu0
    %v370 = vpop.f32.mrb[0].mxu0
    %371 = vdwg.mxu0
    %v372 = vadd.f32 %v94, %v325
    %v373 = vadd.f32 %v95, %v327
    %v374 = vadd.f32 %v96, %v366
    %v375 = vadd.f32 %v97, %v368
    %v376 = vxor.u32 %v372, 2147483648
    %v377 = vxor.u32 %v373, 2147483648
    %v378 = vxor.u32 %v374, 2147483648
    %v379 = vmul.f32 %v376, 1.442695
    %v380 = vpow.pop %v379
    %v381 = vmul.f32 %v377, 1.442695
    %v382 = vpow.pop %v381
    %v383 = vmul.f32 %v378, 1.442695
    %v384 = vpow.pop %v383
    %v385 = vadd.f32 %v380, 1.0
    %v386 = vadd.f32 %v382, 1.0
    %v387 = vadd.f32 %v384, 1.0
    %v388 = vrcp.pop %v385
    %v389 = vmul.f32 1.0, %v388
    %v390 = vrcp.pop %v386
    %v391 = vmul.f32 1.0, %v390
    %v392 = vrcp.pop %v387
    %v393 = vmul.f32 1.0, %v392
    %v394 = vtanh.pop %v375
    %v395 = vmul.f32 %v391, 0.0
    %v396 = vmul.f32 %v389, %v394
    %v397 = vadd.f32 %v395, %v396
    %v398 = vtanh.pop %v397
    %v399 = vmul.f32 %v393, %v398
    %s400 = scalar_lea.vmem %s0, 2
    %v401 = vld [vmem:[%s400] sm:$0x3]
    %403 = vset.pattern.permute.xlu0 0
    %404 = vperm.xlu0 %403, %v401
    %v405 = vpop.permute.xlu0 %404
    %v407 = vmul.f32 %v405, %v52
    %v408 = vmul.f32 %v405, %v56
    %v409 = vmul.f32 %v405, %v60
    %v410 = vmul.f32 %v405, %v64
    %v411 = vadd.f32 %v77, %v407
    %v412 = vadd.f32 %v81, %v408
    %v413 = vadd.f32 %v85, %v409
    %v414 = vadd.f32 %v89, %v410
    %v415 = vpack.c.bf16 %v399, %v399
    %416 = vmatprep.subr.bf16.mxu0 %v227
    %417 = vmatpush1.bf16.msra.mxu0 %v226
    %418 = vmatprep.subr.bf16.mxu0 %v231
    %419 = vmatpush1.bf16.msra.mxu0 %v230
    %420 = vmatprep.subr.bf16.mxu0 %v235
    %421 = vmatpush1.bf16.msra.mxu0 %v234
    %422 = vmatprep.subr.bf16.mxu0 %v239
    %423 = vmatpush1.bf16.msra.mxu0 %v238
    %424 = vmatprep.subr.bf16.mxu0 %v243
    %425 = vmatpush1.bf16.msra.mxu0 %v242
    %426 = vmatprep.subr.bf16.mxu0 %v247
    %427 = vmatpush1.bf16.msra.mxu0 %v246
    %428 = vmatprep.subr.bf16.mxu0 %v251
    %429 = vmatpush1.bf16.msra.mxu0 %v250
    %430 = vmatprep.subr.bf16.mxu0 %v255
    %431 = vmatpush1.bf16.msra.mxu0 %v254
    %432 = vmatprep.subr.bf16.mxu0 0
    %433 = vmatpush1.bf16.msra.mxu0 0
    %434 = vmatprep.subr.bf16.mxu0 0
    %435 = vmatpush1.bf16.msra.mxu0 0
    %436 = vmatprep.subr.bf16.mxu0 0
    %437 = vmatpush1.bf16.msra.mxu0 0
    %438 = vmatprep.subr.bf16.mxu0 0
    %439 = vmatpush1.bf16.msra.mxu0 0
    %440 = vmatprep.subr.bf16.mxu0 0
    %441 = vmatpush1.bf16.msra.mxu0 0
    %442 = vmatprep.subr.bf16.mxu0 0
    %443 = vmatpush1.bf16.msra.mxu0 0
    %444 = vmatprep.subr.bf16.mxu0 0
    %445 = vmatpush1.bf16.msra.mxu0 0
    %446 = vmatprep.subr.bf16.mxu0 0
    %447 = vmatpush1.bf16.msra.mxu0 0
    %448 = vmatprep.mubr.bf16.mxu0 0
    %449 = vmatmul.mubr.bf16.gmra.mrb[0].mxu0 %v415
    %v450 = vpop.f32.mrb[0].mxu0
    %v451 = vadd.f32 0.0, %v450
    %v452 = vpop.f32.mrb[0].mxu0
    %v453 = vadd.f32 0.0, %v452
    %v454 = vpop.f32.mrb[0].mxu0
    %v455 = vpop.f32.mrb[0].mxu0
    %456 = vdwg.mxu0
    %457 = vmatprep.subr.bf16.mxu0 %v229
    %458 = vmatpush1.bf16.msra.mxu0 %v228
    %459 = vmatprep.subr.bf16.mxu0 %v233
    %460 = vmatpush1.bf16.msra.mxu0 %v232
    %461 = vmatprep.subr.bf16.mxu0 %v237
    %462 = vmatpush1.bf16.msra.mxu0 %v236
    %463 = vmatprep.subr.bf16.mxu0 %v241
    %464 = vmatpush1.bf16.msra.mxu0 %v240
    %465 = vmatprep.subr.bf16.mxu0 %v245
    %466 = vmatpush1.bf16.msra.mxu0 %v244
    %467 = vmatprep.subr.bf16.mxu0 %v249
    %468 = vmatpush1.bf16.msra.mxu0 %v248
    %469 = vmatprep.subr.bf16.mxu0 %v253
    %470 = vmatpush1.bf16.msra.mxu0 %v252
    %471 = vmatprep.subr.bf16.mxu0 %v257
    %472 = vmatpush1.bf16.msra.mxu0 %v256
    %473 = vmatprep.subr.bf16.mxu0 0
    %474 = vmatpush1.bf16.msra.mxu0 0
    %475 = vmatprep.subr.bf16.mxu0 0
    %476 = vmatpush1.bf16.msra.mxu0 0
    %477 = vmatprep.subr.bf16.mxu0 0
    %478 = vmatpush1.bf16.msra.mxu0 0
    %479 = vmatprep.subr.bf16.mxu0 0
    %480 = vmatpush1.bf16.msra.mxu0 0
    %481 = vmatprep.subr.bf16.mxu0 0
    %482 = vmatpush1.bf16.msra.mxu0 0
    %483 = vmatprep.subr.bf16.mxu0 0
    %484 = vmatpush1.bf16.msra.mxu0 0
    %485 = vmatprep.subr.bf16.mxu0 0
    %486 = vmatpush1.bf16.msra.mxu0 0
    %487 = vmatprep.subr.bf16.mxu0 0
    %488 = vmatpush1.bf16.msra.mxu0 0
    %489 = vmatprep.mubr.bf16.mxu0 0
    %490 = vmatmul.mubr.bf16.gmra.mrb[0].mxu0 %v415
    %v491 = vpop.f32.mrb[0].mxu0
    %v492 = vadd.f32 0.0, %v491
    %v493 = vpop.f32.mrb[0].mxu0
    %v494 = vadd.f32 0.0, %v493
    %v495 = vpop.f32.mrb[0].mxu0
    %v496 = vpop.f32.mrb[0].mxu0
    %497 = vdwg.mxu0
    %v498 = vadd.f32 %v411, %v451
    %v499 = vadd.f32 %v412, %v453
    %v500 = vadd.f32 %v413, %v492
    %v501 = vadd.f32 %v414, %v494
    %v502 = vxor.u32 %v498, 2147483648
    %v503 = vxor.u32 %v499, 2147483648
    %v504 = vxor.u32 %v500, 2147483648
    %v505 = vmul.f32 %v502, 1.442695
    %v506 = vpow.pop %v505
    %v507 = vmul.f32 %v503, 1.442695
    %v508 = vpow.pop %v507
    %v509 = vmul.f32 %v504, 1.442695
    %v510 = vpow.pop %v509
    %v511 = vadd.f32 %v506, 1.0
    %v512 = vadd.f32 %v508, 1.0
    %v513 = vadd.f32 %v510, 1.0
    %v514 = vrcp.pop %v511
    %v515 = vmul.f32 1.0, %v514
    %v516 = vrcp.pop %v512
    %v517 = vmul.f32 1.0, %v516
    %v518 = vrcp.pop %v513
    %v519 = vmul.f32 1.0, %v518
    %v520 = vtanh.pop %v501
    %v521 = vmul.f32 %v517, %v397
    %v522 = vmul.f32 %v515, %v520
    %v523 = vadd.f32 %v521, %v522
    %v524 = vtanh.pop %v523
    %v525 = vmul.f32 %v519, %v524
    %s526 = scalar_lea.vmem %s0, 4
    %v527 = vld [vmem:[%s526] sm:$0x3]
    %529 = vset.pattern.permute.xlu0 0
    %530 = vperm.xlu0 %529, %v527
    %v531 = vpop.permute.xlu0 %530
    %v533 = vmul.f32 %v531, %v52
    %v534 = vmul.f32 %v531, %v56
    %v535 = vmul.f32 %v531, %v60
    %v536 = vmul.f32 %v531, %v64
    %v537 = vadd.f32 %v77, %v533
    %v538 = vadd.f32 %v81, %v534
    %v539 = vadd.f32 %v85, %v535
    %v540 = vadd.f32 %v89, %v536
    %v541 = vpack.c.bf16 %v525, %v525
    %542 = vmatprep.subr.bf16.mxu0 %v227
    %543 = vmatpush1.bf16.msra.mxu0 %v226
    %544 = vmatprep.subr.bf16.mxu0 %v231
    %545 = vmatpush1.bf16.msra.mxu0 %v230
    %546 = vmatprep.subr.bf16.mxu0 %v235
    %547 = vmatpush1.bf16.msra.mxu0 %v234
    %548 = vmatprep.subr.bf16.mxu0 %v239
    %549 = vmatpush1.bf16.msra.mxu0 %v238
    %550 = vmatprep.subr.bf16.mxu0 %v243
    %551 = vmatpush1.bf16.msra.mxu0 %v242
    %552 = vmatprep.subr.bf16.mxu0 %v247
    %553 = vmatpush1.bf16.msra.mxu0 %v246
    %554 = vmatprep.subr.bf16.mxu0 %v251
    %555 = vmatpush1.bf16.msra.mxu0 %v250
    %556 = vmatprep.subr.bf16.mxu0 %v255
    %557 = vmatpush1.bf16.msra.mxu0 %v254
    %558 = vmatprep.subr.bf16.mxu0 0
    %559 = vmatpush1.bf16.msra.mxu0 0
    %560 = vmatprep.subr.bf16.mxu0 0
    %561 = vmatpush1.bf16.msra.mxu0 0
    %562 = vmatprep.subr.bf16.mxu0 0
    %563 = vmatpush1.bf16.msra.mxu0 0
    %564 = vmatprep.subr.bf16.mxu0 0
    %565 = vmatpush1.bf16.msra.mxu0 0
    %566 = vmatprep.subr.bf16.mxu0 0
    %567 = vmatpush1.bf16.msra.mxu0 0
    %568 = vmatprep.subr.bf16.mxu0 0
    %569 = vmatpush1.bf16.msra.mxu0 0
    %570 = vmatprep.subr.bf16.mxu0 0
    %571 = vmatpush1.bf16.msra.mxu0 0
    %572 = vmatprep.subr.bf16.mxu0 0
    %573 = vmatpush1.bf16.msra.mxu0 0
    %574 = vmatprep.mubr.bf16.mxu0 0
    %575 = vmatmul.mubr.bf16.gmra.mrb[0].mxu0 %v541
    %v576 = vpop.f32.mrb[0].mxu0
    %v577 = vadd.f32 0.0, %v576
    %v578 = vpop.f32.mrb[0].mxu0
    %v579 = vadd.f32 0.0, %v578
    %v580 = vpop.f32.mrb[0].mxu0
    %v581 = vpop.f32.mrb[0].mxu0
    %582 = vdwg.mxu0
    %583 = vmatprep.subr.bf16.mxu0 %v229
    %584 = vmatpush1.bf16.msra.mxu0 %v228
    %585 = vmatprep.subr.bf16.mxu0 %v233
    %586 = vmatpush1.bf16.msra.mxu0 %v232
    %587 = vmatprep.subr.bf16.mxu0 %v237
    %588 = vmatpush1.bf16.msra.mxu0 %v236
    %589 = vmatprep.subr.bf16.mxu0 %v241
    %590 = vmatpush1.bf16.msra.mxu0 %v240
    %591 = vmatprep.subr.bf16.mxu0 %v245
    %592 = vmatpush1.bf16.msra.mxu0 %v244
    %593 = vmatprep.subr.bf16.mxu0 %v249
    %594 = vmatpush1.bf16.msra.mxu0 %v248
    %595 = vmatprep.subr.bf16.mxu0 %v253
    %596 = vmatpush1.bf16.msra.mxu0 %v252
    %597 = vmatprep.subr.bf16.mxu0 %v257
    %598 = vmatpush1.bf16.msra.mxu0 %v256
    %599 = vmatprep.subr.bf16.mxu0 0
    %600 = vmatpush1.bf16.msra.mxu0 0
    %601 = vmatprep.subr.bf16.mxu0 0
    %602 = vmatpush1.bf16.msra.mxu0 0
    %603 = vmatprep.subr.bf16.mxu0 0
    %604 = vmatpush1.bf16.msra.mxu0 0
    %605 = vmatprep.subr.bf16.mxu0 0
    %606 = vmatpush1.bf16.msra.mxu0 0
    %607 = vmatprep.subr.bf16.mxu0 0
    %608 = vmatpush1.bf16.msra.mxu0 0
    %609 = vmatprep.subr.bf16.mxu0 0
    %610 = vmatpush1.bf16.msra.mxu0 0
    %611 = vmatprep.subr.bf16.mxu0 0
    %612 = vmatpush1.bf16.msra.mxu0 0
    %613 = vmatprep.subr.bf16.mxu0 0
    %614 = vmatpush1.bf16.msra.mxu0 0
    %615 = vmatprep.mubr.bf16.mxu0 0
    %616 = vmatmul.mubr.bf16.gmra.mrb[0].mxu0 %v541
    %v617 = vpop.f32.mrb[0].mxu0
    %v618 = vadd.f32 0.0, %v617
    %v619 = vpop.f32.mrb[0].mxu0
    %v620 = vadd.f32 0.0, %v619
    %v621 = vpop.f32.mrb[0].mxu0
    %v622 = vpop.f32.mrb[0].mxu0
    %623 = vdwg.mxu0
    %v624 = vadd.f32 %v537, %v577
    %v625 = vadd.f32 %v538, %v579
    %v626 = vadd.f32 %v539, %v618
    %v627 = vadd.f32 %v540, %v620
    %v628 = vxor.u32 %v624, 2147483648
    %v629 = vxor.u32 %v625, 2147483648
    %v630 = vxor.u32 %v626, 2147483648
    %v631 = vmul.f32 %v628, 1.442695
    %v632 = vpow.pop %v631
    %v633 = vmul.f32 %v629, 1.442695
    %v634 = vpow.pop %v633
    %v635 = vmul.f32 %v630, 1.442695
    %v636 = vpow.pop %v635
    %v637 = vadd.f32 %v632, 1.0
    %v638 = vadd.f32 %v634, 1.0
    %v639 = vadd.f32 %v636, 1.0
    %v640 = vrcp.pop %v637
    %v641 = vmul.f32 1.0, %v640
    %v642 = vrcp.pop %v638
    %v643 = vmul.f32 1.0, %v642
    %v644 = vrcp.pop %v639
    %v645 = vmul.f32 1.0, %v644
    %v646 = vtanh.pop %v627
    %v647 = vmul.f32 %v643, %v523
    %v648 = vmul.f32 %v641, %v646
    %v649 = vadd.f32 %v647, %v648
    %v650 = vtanh.pop %v649
    %v651 = vmul.f32 %v645, %v650
    %s652 = scalar_lea.vmem %s0, 6
    %v653 = vld [vmem:[%s652] sm:$0x3]
    %655 = vset.pattern.permute.xlu0 0
    %656 = vperm.xlu0 %655, %v653
    %v657 = vpop.permute.xlu0 %656
    %v659 = vmul.f32 %v657, %v52
    %v660 = vmul.f32 %v657, %v56
    %v661 = vmul.f32 %v657, %v60
    %v662 = vmul.f32 %v657, %v64
    %v663 = vadd.f32 %v77, %v659
    %v664 = vadd.f32 %v81, %v660
    %v665 = vadd.f32 %v85, %v661
    %v666 = vadd.f32 %v89, %v662
    %v667 = vpack.c.bf16 %v651, %v651
    %668 = vmatprep.subr.bf16.mxu0 %v227
    %669 = vmatpush1.bf16.msra.mxu0 %v226
    %670 = vmatprep.subr.bf16.mxu0 %v231
    %671 = vmatpush1.bf16.msra.mxu0 %v230
    %672 = vmatprep.subr.bf16.mxu0 %v235
    %673 = vmatpush1.bf16.msra.mxu0 %v234
    %674 = vmatprep.subr.bf16.mxu0 %v239
    %675 = vmatpush1.bf16.msra.mxu0 %v238
    %676 = vmatprep.subr.bf16.mxu0 %v243
    %677 = vmatpush1.bf16.msra.mxu0 %v242
    %678 = vmatprep.subr.bf16.mxu0 %v247
    %679 = vmatpush1.bf16.msra.mxu0 %v246
    %680 = vmatprep.subr.bf16.mxu0 %v251
    %681 = vmatpush1.bf16.msra.mxu0 %v250
    %682 = vmatprep.subr.bf16.mxu0 %v255
    %683 = vmatpush1.bf16.msra.mxu0 %v254
    %684 = vmatprep.subr.bf16.mxu0 0
    %685 = vmatpush1.bf16.msra.mxu0 0
    %686 = vmatprep.subr.bf16.mxu0 0
    %687 = vmatpush1.bf16.msra.mxu0 0
    %688 = vmatprep.subr.bf16.mxu0 0
    %689 = vmatpush1.bf16.msra.mxu0 0
    %690 = vmatprep.subr.bf16.mxu0 0
    %691 = vmatpush1.bf16.msra.mxu0 0
    %692 = vmatprep.subr.bf16.mxu0 0
    %693 = vmatpush1.bf16.msra.mxu0 0
    %694 = vmatprep.subr.bf16.mxu0 0
    %695 = vmatpush1.bf16.msra.mxu0 0
    %696 = vmatprep.subr.bf16.mxu0 0
    %697 = vmatpush1.bf16.msra.mxu0 0
    %698 = vmatprep.subr.bf16.mxu0 0
    %699 = vmatpush1.bf16.msra.mxu0 0
    %700 = vmatprep.mubr.bf16.mxu0 0
    %701 = vmatmul.mubr.bf16.gmra.mrb[0].mxu0 %v667
    %v702 = vpop.f32.mrb[0].mxu0
    %v703 = vadd.f32 0.0, %v702
    %v704 = vpop.f32.mrb[0].mxu0
    %v705 = vadd.f32 0.0, %v704
    %v706 = vpop.f32.mrb[0].mxu0
    %v707 = vpop.f32.mrb[0].mxu0
    %708 = vdwg.mxu0
    %709 = vmatprep.subr.bf16.mxu0 %v229
    %710 = vmatpush1.bf16.msra.mxu0 %v228
    %711 = vmatprep.subr.bf16.mxu0 %v233
    %712 = vmatpush1.bf16.msra.mxu0 %v232
    %713 = vmatprep.subr.bf16.mxu0 %v237
    %714 = vmatpush1.bf16.msra.mxu0 %v236
    %715 = vmatprep.subr.bf16.mxu0 %v241
    %716 = vmatpush1.bf16.msra.mxu0 %v240
    %717 = vmatprep.subr.bf16.mxu0 %v245
    %718 = vmatpush1.bf16.msra.mxu0 %v244
    %719 = vmatprep.subr.bf16.mxu0 %v249
    %720 = vmatpush1.bf16.msra.mxu0 %v248
    %721 = vmatprep.subr.bf16.mxu0 %v253
    %722 = vmatpush1.bf16.msra.mxu0 %v252
    %723 = vmatprep.subr.bf16.mxu0 %v257
    %724 = vmatpush1.bf16.msra.mxu0 %v256
    %725 = vmatprep.subr.bf16.mxu0 0
    %726 = vmatpush1.bf16.msra.mxu0 0
    %727 = vmatprep.subr.bf16.mxu0 0
    %728 = vmatpush1.bf16.msra.mxu0 0
    %729 = vmatprep.subr.bf16.mxu0 0
    %730 = vmatpush1.bf16.msra.mxu0 0
    %731 = vmatprep.subr.bf16.mxu0 0
    %732 = vmatpush1.bf16.msra.mxu0 0
    %733 = vmatprep.subr.bf16.mxu0 0
    %734 = vmatpush1.bf16.msra.mxu0 0
    %735 = vmatprep.subr.bf16.mxu0 0
    %736 = vmatpush1.bf16.msra.mxu0 0
    %737 = vmatprep.subr.bf16.mxu0 0
    %738 = vmatpush1.bf16.msra.mxu0 0
    %739 = vmatprep.subr.bf16.mxu0 0
    %740 = vmatpush1.bf16.msra.mxu0 0
    %741 = vmatprep.mubr.bf16.mxu0 0
    %742 = vmatmul.mubr.bf16.gmra.mrb[0].mxu0 %v667
    %v743 = vpop.f32.mrb[0].mxu0
    %v744 = vadd.f32 0.0, %v743
    %v745 = vpop.f32.mrb[0].mxu0
    %v746 = vadd.f32 0.0, %v745
    %v747 = vpop.f32.mrb[0].mxu0
    %v748 = vpop.f32.mrb[0].mxu0
    %749 = vdwg.mxu0
    %v750 = vadd.f32 %v663, %v703
    %v751 = vadd.f32 %v664, %v705
    %v752 = vadd.f32 %v665, %v744
    %v753 = vadd.f32 %v666, %v746
    %v754 = vxor.u32 %v750, 2147483648
    %v755 = vxor.u32 %v751, 2147483648
    %v756 = vxor.u32 %v752, 2147483648
    %v757 = vmul.f32 %v754, 1.442695
    %v758 = vpow.pop %v757
    %v759 = vmul.f32 %v755, 1.442695
    %v760 = vpow.pop %v759
    %v761 = vmul.f32 %v756, 1.442695
    %v762 = vpow.pop %v761
    %v763 = vadd.f32 %v758, 1.0
    %v764 = vadd.f32 %v760, 1.0
    %v765 = vadd.f32 %v762, 1.0
    %v766 = vrcp.pop %v763
    %v767 = vmul.f32 1.0, %v766
    %v768 = vrcp.pop %v764
    %v769 = vmul.f32 1.0, %v768
    %v770 = vrcp.pop %v765
    %v771 = vmul.f32 1.0, %v770
    %v772 = vtanh.pop %v753
    %v773 = vmul.f32 %v769, %v649
    %v774 = vmul.f32 %v767, %v772
    %v775 = vadd.f32 %v773, %v774
    %v776 = vtanh.pop %v775
    %v777 = vmul.f32 %v771, %v776
    %s778 = scalar_lea.vmem %s0, 8
    %v779 = vld [vmem:[%s778] sm:$0x3]
    %781 = vset.pattern.permute.xlu0 0
    %782 = vperm.xlu0 %781, %v779
    %v783 = vpop.permute.xlu0 %782
    %v785 = vmul.f32 %v783, %v52
    %v786 = vmul.f32 %v783, %v56
    %v787 = vmul.f32 %v783, %v60
    %v788 = vmul.f32 %v783, %v64
    %v789 = vadd.f32 %v77, %v785
    %v790 = vadd.f32 %v81, %v786
    %v791 = vadd.f32 %v85, %v787
    %v792 = vadd.f32 %v89, %v788
    %v793 = vpack.c.bf16 %v777, %v777
    %794 = vmatprep.subr.bf16.mxu0 %v227
    %795 = vmatpush1.bf16.msra.mxu0 %v226
    %796 = vmatprep.subr.bf16.mxu0 %v231
    %797 = vmatpush1.bf16.msra.mxu0 %v230
    %798 = vmatprep.subr.bf16.mxu0 %v235
    %799 = vmatpush1.bf16.msra.mxu0 %v234
    %800 = vmatprep.subr.bf16.mxu0 %v239
    %801 = vmatpush1.bf16.msra.mxu0 %v238
    %802 = vmatprep.subr.bf16.mxu0 %v243
    %803 = vmatpush1.bf16.msra.mxu0 %v242
    %804 = vmatprep.subr.bf16.mxu0 %v247
    %805 = vmatpush1.bf16.msra.mxu0 %v246
    %806 = vmatprep.subr.bf16.mxu0 %v251
    %807 = vmatpush1.bf16.msra.mxu0 %v250
    %808 = vmatprep.subr.bf16.mxu0 %v255
    %809 = vmatpush1.bf16.msra.mxu0 %v254
    %810 = vmatprep.subr.bf16.mxu0 0
    %811 = vmatpush1.bf16.msra.mxu0 0
    %812 = vmatprep.subr.bf16.mxu0 0
    %813 = vmatpush1.bf16.msra.mxu0 0
    %814 = vmatprep.subr.bf16.mxu0 0
    %815 = vmatpush1.bf16.msra.mxu0 0
    %816 = vmatprep.subr.bf16.mxu0 0
    %817 = vmatpush1.bf16.msra.mxu0 0
    %818 = vmatprep.subr.bf16.mxu0 0
    %819 = vmatpush1.bf16.msra.mxu0 0
    %820 = vmatprep.subr.bf16.mxu0 0
    %821 = vmatpush1.bf16.msra.mxu0 0
    %822 = vmatprep.subr.bf16.mxu0 0
    %823 = vmatpush1.bf16.msra.mxu0 0
    %824 = vmatprep.subr.bf16.mxu0 0
    %825 = vmatpush1.bf16.msra.mxu0 0
    %826 = vmatprep.mubr.bf16.mxu0 0
    %827 = vmatmul.mubr.bf16.gmra.mrb[0].mxu0 %v793
    %v828 = vpop.f32.mrb[0].mxu0
    %v829 = vadd.f32 0.0, %v828
    %v830 = vpop.f32.mrb[0].mxu0
    %v831 = vadd.f32 0.0, %v830
    %v832 = vpop.f32.mrb[0].mxu0
    %v833 = vpop.f32.mrb[0].mxu0
    %834 = vdwg.mxu0
    %835 = vmatprep.subr.bf16.mxu0 %v229
    %836 = vmatpush1.bf16.msra.mxu0 %v228
    %837 = vmatprep.subr.bf16.mxu0 %v233
    %838 = vmatpush1.bf16.msra.mxu0 %v232
    %839 = vmatprep.subr.bf16.mxu0 %v237
    %840 = vmatpush1.bf16.msra.mxu0 %v236
    %841 = vmatprep.subr.bf16.mxu0 %v241
    %842 = vmatpush1.bf16.msra.mxu0 %v240
    %843 = vmatprep.subr.bf16.mxu0 %v245
    %844 = vmatpush1.bf16.msra.mxu0 %v244
    %845 = vmatprep.subr.bf16.mxu0 %v249
    %846 = vmatpush1.bf16.msra.mxu0 %v248
    %847 = vmatprep.subr.bf16.mxu0 %v253
    %848 = vmatpush1.bf16.msra.mxu0 %v252
    %849 = vmatprep.subr.bf16.mxu0 %v257
    %850 = vmatpush1.bf16.msra.mxu0 %v256
    %851 = vmatprep.subr.bf16.mxu0 0
    %852 = vmatpush1.bf16.msra.mxu0 0
    %853 = vmatprep.subr.bf16.mxu0 0
    %854 = vmatpush1.bf16.msra.mxu0 0
    %855 = vmatprep.subr.bf16.mxu0 0
    %856 = vmatpush1.bf16.msra.mxu0 0
    %857 = vmatprep.subr.bf16.mxu0 0
    %858 = vmatpush1.bf16.msra.mxu0 0
    %859 = vmatprep.subr.bf16.mxu0 0
    %860 = vmatpush1.bf16.msra.mxu0 0
    %861 = vmatprep.subr.bf16.mxu0 0
    %862 = vmatpush1.bf16.msra.mxu0 0
    %863 = vmatprep.subr.bf16.mxu0 0
    %864 = vmatpush1.bf16.msra.mxu0 0
    %865 = vmatprep.subr.bf16.mxu0 0
    %866 = vmatpush1.bf16.msra.mxu0 0
    %867 = vmatprep.mubr.bf16.mxu0 0
    %868 = vmatmul.mubr.bf16.gmra.mrb[0].mxu0 %v793
    %v869 = vpop.f32.mrb[0].mxu0
    %v870 = vadd.f32 0.0, %v869
    %v871 = vpop.f32.mrb[0].mxu0
    %v872 = vadd.f32 0.0, %v871
    %v873 = vpop.f32.mrb[0].mxu0
    %v874 = vpop.f32.mrb[0].mxu0
    %875 = vdwg.mxu0
    %v876 = vadd.f32 %v789, %v829
    %v877 = vadd.f32 %v790, %v831
    %v878 = vadd.f32 %v791, %v870
    %v879 = vadd.f32 %v792, %v872
    %v880 = vxor.u32 %v876, 2147483648
    %v881 = vxor.u32 %v877, 2147483648
    %v882 = vxor.u32 %v878, 2147483648
    %v883 = vmul.f32 %v880, 1.442695
    %v884 = vpow.pop %v883
    %v885 = vmul.f32 %v881, 1.442695
    %v886 = vpow.pop %v885
    %v887 = vmul.f32 %v882, 1.442695
    %v888 = vpow.pop %v887
    %v889 = vadd.f32 %v884, 1.0
    %v890 = vadd.f32 %v886, 1.0
    %v891 = vadd.f32 %v888, 1.0
    %v892 = vrcp.pop %v889
    %v893 = vmul.f32 1.0, %v892
    %v894 = vrcp.pop %v890
    %v895 = vmul.f32 1.0, %v894
    %v896 = vrcp.pop %v891
    %v897 = vmul.f32 1.0, %v896
    %v898 = vtanh.pop %v879
    %v899 = vmul.f32 %v895, %v775
    %v900 = vmul.f32 %v893, %v898
    %v901 = vadd.f32 %v899, %v900
    %v902 = vtanh.pop %v901
    %v903 = vmul.f32 %v897, %v902
    %s904 = scalar_lea.vmem %s0, 10
    %v905 = vld [vmem:[%s904] sm:$0x3]
    %907 = vset.pattern.permute.xlu0 0
    %908 = vperm.xlu0 %907, %v905
    %v909 = vpop.permute.xlu0 %908
    %v911 = vmul.f32 %v909, %v52
    %v912 = vmul.f32 %v909, %v56
    %v913 = vmul.f32 %v909, %v60
    %v914 = vmul.f32 %v909, %v64
    %v915 = vadd.f32 %v77, %v911
    %v916 = vadd.f32 %v81, %v912
    %v917 = vadd.f32 %v85, %v913
    %v918 = vadd.f32 %v89, %v914
    %v919 = vpack.c.bf16 %v903, %v903
    %920 = vmatprep.subr.bf16.mxu0 %v227
    %921 = vmatpush1.bf16.msra.mxu0 %v226
    %922 = vmatprep.subr.bf16.mxu0 %v231
    %923 = vmatpush1.bf16.msra.mxu0 %v230
    %924 = vmatprep.subr.bf16.mxu0 %v235
    %925 = vmatpush1.bf16.msra.mxu0 %v234
    %926 = vmatprep.subr.bf16.mxu0 %v239
    %927 = vmatpush1.bf16.msra.mxu0 %v238
    %928 = vmatprep.subr.bf16.mxu0 %v243
    %929 = vmatpush1.bf16.msra.mxu0 %v242
    %930 = vmatprep.subr.bf16.mxu0 %v247
    %931 = vmatpush1.bf16.msra.mxu0 %v246
    %932 = vmatprep.subr.bf16.mxu0 %v251
    %933 = vmatpush1.bf16.msra.mxu0 %v250
    %934 = vmatprep.subr.bf16.mxu0 %v255
    %935 = vmatpush1.bf16.msra.mxu0 %v254
    %936 = vmatprep.subr.bf16.mxu0 0
    %937 = vmatpush1.bf16.msra.mxu0 0
    %938 = vmatprep.subr.bf16.mxu0 0
    %939 = vmatpush1.bf16.msra.mxu0 0
    %940 = vmatprep.subr.bf16.mxu0 0
    %941 = vmatpush1.bf16.msra.mxu0 0
    %942 = vmatprep.subr.bf16.mxu0 0
    %943 = vmatpush1.bf16.msra.mxu0 0
    %944 = vmatprep.subr.bf16.mxu0 0
    %945 = vmatpush1.bf16.msra.mxu0 0
    %946 = vmatprep.subr.bf16.mxu0 0
    %947 = vmatpush1.bf16.msra.mxu0 0
    %948 = vmatprep.subr.bf16.mxu0 0
    %949 = vmatpush1.bf16.msra.mxu0 0
    %950 = vmatprep.subr.bf16.mxu0 0
    %951 = vmatpush1.bf16.msra.mxu0 0
    %952 = vmatprep.mubr.bf16.mxu0 0
    %953 = vmatmul.mubr.bf16.gmra.mrb[0].mxu0 %v919
    %v954 = vpop.f32.mrb[0].mxu0
    %v955 = vadd.f32 0.0, %v954
    %v956 = vpop.f32.mrb[0].mxu0
    %v957 = vadd.f32 0.0, %v956
    %v958 = vpop.f32.mrb[0].mxu0
    %v959 = vpop.f32.mrb[0].mxu0
    %960 = vdwg.mxu0
    %961 = vmatprep.subr.bf16.mxu0 %v229
    %962 = vmatpush1.bf16.msra.mxu0 %v228
    %963 = vmatprep.subr.bf16.mxu0 %v233
    %964 = vmatpush1.bf16.msra.mxu0 %v232
    %965 = vmatprep.subr.bf16.mxu0 %v237
    %966 = vmatpush1.bf16.msra.mxu0 %v236
    %967 = vmatprep.subr.bf16.mxu0 %v241
    %968 = vmatpush1.bf16.msra.mxu0 %v240
    %969 = vmatprep.subr.bf16.mxu0 %v245
    %970 = vmatpush1.bf16.msra.mxu0 %v244
    %971 = vmatprep.subr.bf16.mxu0 %v249
    %972 = vmatpush1.bf16.msra.mxu0 %v248
    %973 = vmatprep.subr.bf16.mxu0 %v253
    %974 = vmatpush1.bf16.msra.mxu0 %v252
    %975 = vmatprep.subr.bf16.mxu0 %v257
    %976 = vmatpush1.bf16.msra.mxu0 %v256
    %977 = vmatprep.subr.bf16.mxu0 0
    %978 = vmatpush1.bf16.msra.mxu0 0
    %979 = vmatprep.subr.bf16.mxu0 0
    %980 = vmatpush1.bf16.msra.mxu0 0
    %981 = vmatprep.subr.bf16.mxu0 0
    %982 = vmatpush1.bf16.msra.mxu0 0
    %983 = vmatprep.subr.bf16.mxu0 0
    %984 = vmatpush1.bf16.msra.mxu0 0
    %985 = vmatprep.subr.bf16.mxu0 0
    %986 = vmatpush1.bf16.msra.mxu0 0
    %987 = vmatprep.subr.bf16.mxu0 0
    %988 = vmatpush1.bf16.msra.mxu0 0
    %989 = vmatprep.subr.bf16.mxu0 0
    %990 = vmatpush1.bf16.msra.mxu0 0
    %991 = vmatprep.subr.bf16.mxu0 0
    %992 = vmatpush1.bf16.msra.mxu0 0
    %993 = vmatprep.mubr.bf16.mxu0 0
    %994 = vmatmul.mubr.bf16.gmra.mrb[0].mxu0 %v919
    %v995 = vpop.f32.mrb[0].mxu0
    %v996 = vadd.f32 0.0, %v995
    %v997 = vpop.f32.mrb[0].mxu0
    %v998 = vadd.f32 0.0, %v997
    %v999 = vpop.f32.mrb[0].mxu0
    %v1000 = vpop.f32.mrb[0].mxu0
    %1001 = vdwg.mxu0
    %v1002 = vadd.f32 %v915, %v955
    %v1003 = vadd.f32 %v916, %v957
    %v1004 = vadd.f32 %v917, %v996
    %v1005 = vadd.f32 %v918, %v998
    %v1006 = vxor.u32 %v1002, 2147483648
    %v1007 = vxor.u32 %v1003, 2147483648
    %v1008 = vxor.u32 %v1004, 2147483648
    %v1009 = vmul.f32 %v1006, 1.442695
    %v1010 = vpow.pop %v1009
    %v1011 = vmul.f32 %v1007, 1.442695
    %v1012 = vpow.pop %v1011
    %v1013 = vmul.f32 %v1008, 1.442695
    %v1014 = vpow.pop %v1013
    %v1015 = vadd.f32 %v1010, 1.0
    %v1016 = vadd.f32 %v1012, 1.0
    %v1017 = vadd.f32 %v1014, 1.0
    %v1018 = vrcp.pop %v1015
    %v1019 = vmul.f32 1.0, %v1018
    %v1020 = vrcp.pop %v1016
    %v1021 = vmul.f32 1.0, %v1020
    %v1022 = vrcp.pop %v1017
    %v1023 = vmul.f32 1.0, %v1022
    %v1024 = vtanh.pop %v1005
    %v1025 = vmul.f32 %v1021, %v901
    %v1026 = vmul.f32 %v1019, %v1024
    %v1027 = vadd.f32 %v1025, %v1026
    %v1028 = vtanh.pop %v1027
    %v1029 = vmul.f32 %v1023, %v1028
    %s1030 = scalar_lea.vmem %s0, 12
    %v1031 = vld [vmem:[%s1030] sm:$0x3]
    %1033 = vset.pattern.permute.xlu0 0
    %1034 = vperm.xlu0 %1033, %v1031
    %v1035 = vpop.permute.xlu0 %1034
    %v1037 = vmul.f32 %v1035, %v52
    %v1038 = vmul.f32 %v1035, %v56
    %v1039 = vmul.f32 %v1035, %v60
    %v1040 = vmul.f32 %v1035, %v64
    %v1041 = vadd.f32 %v77, %v1037
    %v1042 = vadd.f32 %v81, %v1038
    %v1043 = vadd.f32 %v85, %v1039
    %v1044 = vadd.f32 %v89, %v1040
    %v1045 = vpack.c.bf16 %v1029, %v1029
    %1046 = vmatprep.subr.bf16.mxu0 %v227
    %1047 = vmatpush1.bf16.msra.mxu0 %v226
    %1048 = vmatprep.subr.bf16.mxu0 %v231
    %1049 = vmatpush1.bf16.msra.mxu0 %v230
    %1050 = vmatprep.subr.bf16.mxu0 %v235
    %1051 = vmatpush1.bf16.msra.mxu0 %v234
    %1052 = vmatprep.subr.bf16.mxu0 %v239
    %1053 = vmatpush1.bf16.msra.mxu0 %v238
    %1054 = vmatprep.subr.bf16.mxu0 %v243
    %1055 = vmatpush1.bf16.msra.mxu0 %v242
    %1056 = vmatprep.subr.bf16.mxu0 %v247
    %1057 = vmatpush1.bf16.msra.mxu0 %v246
    %1058 = vmatprep.subr.bf16.mxu0 %v251
    %1059 = vmatpush1.bf16.msra.mxu0 %v250
    %1060 = vmatprep.subr.bf16.mxu0 %v255
    %1061 = vmatpush1.bf16.msra.mxu0 %v254
    %1062 = vmatprep.subr.bf16.mxu0 0
    %1063 = vmatpush1.bf16.msra.mxu0 0
    %1064 = vmatprep.subr.bf16.mxu0 0
    %1065 = vmatpush1.bf16.msra.mxu0 0
    %1066 = vmatprep.subr.bf16.mxu0 0
    %1067 = vmatpush1.bf16.msra.mxu0 0
    %1068 = vmatprep.subr.bf16.mxu0 0
    %1069 = vmatpush1.bf16.msra.mxu0 0
    %1070 = vmatprep.subr.bf16.mxu0 0
    %1071 = vmatpush1.bf16.msra.mxu0 0
    %1072 = vmatprep.subr.bf16.mxu0 0
    %1073 = vmatpush1.bf16.msra.mxu0 0
    %1074 = vmatprep.subr.bf16.mxu0 0
    %1075 = vmatpush1.bf16.msra.mxu0 0
    %1076 = vmatprep.subr.bf16.mxu0 0
    %1077 = vmatpush1.bf16.msra.mxu0 0
    %1078 = vmatprep.mubr.bf16.mxu0 0
    %1079 = vmatmul.mubr.bf16.gmra.mrb[0].mxu0 %v1045
    %v1080 = vpop.f32.mrb[0].mxu0
    %v1081 = vadd.f32 0.0, %v1080
    %v1082 = vpop.f32.mrb[0].mxu0
    %v1083 = vadd.f32 0.0, %v1082
    %v1084 = vpop.f32.mrb[0].mxu0
    %v1085 = vpop.f32.mrb[0].mxu0
    %1086 = vdwg.mxu0
    %1087 = vmatprep.subr.bf16.mxu0 %v229
    %1088 = vmatpush1.bf16.msra.mxu0 %v228
    %1089 = vmatprep.subr.bf16.mxu0 %v233
    %1090 = vmatpush1.bf16.msra.mxu0 %v232
    %1091 = vmatprep.subr.bf16.mxu0 %v237
    %1092 = vmatpush1.bf16.msra.mxu0 %v236
    %1093 = vmatprep.subr.bf16.mxu0 %v241
    %1094 = vmatpush1.bf16.msra.mxu0 %v240
    %1095 = vmatprep.subr.bf16.mxu0 %v245
    %1096 = vmatpush1.bf16.msra.mxu0 %v244
    %1097 = vmatprep.subr.bf16.mxu0 %v249
    %1098 = vmatpush1.bf16.msra.mxu0 %v248
    %1099 = vmatprep.subr.bf16.mxu0 %v253
    %1100 = vmatpush1.bf16.msra.mxu0 %v252
    %1101 = vmatprep.subr.bf16.mxu0 %v257
    %1102 = vmatpush1.bf16.msra.mxu0 %v256
    %1103 = vmatprep.subr.bf16.mxu0 0
    %1104 = vmatpush1.bf16.msra.mxu0 0
    %1105 = vmatprep.subr.bf16.mxu0 0
    %1106 = vmatpush1.bf16.msra.mxu0 0
    %1107 = vmatprep.subr.bf16.mxu0 0
    %1108 = vmatpush1.bf16.msra.mxu0 0
    %1109 = vmatprep.subr.bf16.mxu0 0
    %1110 = vmatpush1.bf16.msra.mxu0 0
    %1111 = vmatprep.subr.bf16.mxu0 0
    %1112 = vmatpush1.bf16.msra.mxu0 0
    %1113 = vmatprep.subr.bf16.mxu0 0
    %1114 = vmatpush1.bf16.msra.mxu0 0
    %1115 = vmatprep.subr.bf16.mxu0 0
    %1116 = vmatpush1.bf16.msra.mxu0 0
    %1117 = vmatprep.subr.bf16.mxu0 0
    %1118 = vmatpush1.bf16.msra.mxu0 0
    %1119 = vmatprep.mubr.bf16.mxu0 0
    %1120 = vmatmul.mubr.bf16.gmra.mrb[0].mxu0 %v1045
    %v1121 = vpop.f32.mrb[0].mxu0
    %v1122 = vadd.f32 0.0, %v1121
    %v1123 = vpop.f32.mrb[0].mxu0
    %v1124 = vadd.f32 0.0, %v1123
    %v1125 = vpop.f32.mrb[0].mxu0
    %v1126 = vpop.f32.mrb[0].mxu0
    %1127 = vdwg.mxu0
    %v1128 = vadd.f32 %v1041, %v1081
    %v1129 = vadd.f32 %v1042, %v1083
    %v1130 = vadd.f32 %v1043, %v1122
    %v1131 = vadd.f32 %v1044, %v1124
    %v1132 = vxor.u32 %v1128, 2147483648
    %v1133 = vxor.u32 %v1129, 2147483648
    %v1134 = vxor.u32 %v1130, 2147483648
    %v1135 = vmul.f32 %v1132, 1.442695
    %v1136 = vpow.pop %v1135
    %v1137 = vmul.f32 %v1133, 1.442695
    %v1138 = vpow.pop %v1137
    %v1139 = vmul.f32 %v1134, 1.442695
    %v1140 = vpow.pop %v1139
    %v1141 = vadd.f32 %v1136, 1.0
    %v1142 = vadd.f32 %v1138, 1.0
    %v1143 = vadd.f32 %v1140, 1.0
    %v1144 = vrcp.pop %v1141
    %v1145 = vmul.f32 1.0, %v1144
    %v1146 = vrcp.pop %v1142
    %v1147 = vmul.f32 1.0, %v1146
    %v1148 = vrcp.pop %v1143
    %v1149 = vmul.f32 1.0, %v1148
    %v1150 = vtanh.pop %v1131
    %v1151 = vmul.f32 %v1147, %v1027
    %v1152 = vmul.f32 %v1145, %v1150
    %v1153 = vadd.f32 %v1151, %v1152
    %v1154 = vtanh.pop %v1153
    %v1155 = vmul.f32 %v1149, %v1154
    %s1156 = scalar_lea.vmem %s0, 14
    %v1157 = vld [vmem:[%s1156] sm:$0x3]
    %1159 = vset.pattern.permute.xlu0 0
    %1160 = vperm.xlu0 %1159, %v1157
    %v1161 = vpop.permute.xlu0 %1160
    %v1163 = vmul.f32 %v1161, %v52
    %v1164 = vmul.f32 %v1161, %v56
    %v1165 = vmul.f32 %v1161, %v60
    %v1166 = vmul.f32 %v1161, %v64
    %v1167 = vadd.f32 %v77, %v1163
    %v1168 = vadd.f32 %v81, %v1164
    %v1169 = vadd.f32 %v85, %v1165
    %v1170 = vadd.f32 %v89, %v1166
    %v1171 = vpack.c.bf16 %v1155, %v1155
    %1172 = vmatprep.subr.bf16.mxu0 %v227
    %1173 = vmatpush1.bf16.msra.mxu0 %v226
    %1174 = vmatprep.subr.bf16.mxu0 %v231
    %1175 = vmatpush1.bf16.msra.mxu0 %v230
    %1176 = vmatprep.subr.bf16.mxu0 %v235
    %1177 = vmatpush1.bf16.msra.mxu0 %v234
    %1178 = vmatprep.subr.bf16.mxu0 %v239
    %1179 = vmatpush1.bf16.msra.mxu0 %v238
    %1180 = vmatprep.subr.bf16.mxu0 %v243
    %1181 = vmatpush1.bf16.msra.mxu0 %v242
    %1182 = vmatprep.subr.bf16.mxu0 %v247
    %1183 = vmatpush1.bf16.msra.mxu0 %v246
    %1184 = vmatprep.subr.bf16.mxu0 %v251
    %1185 = vmatpush1.bf16.msra.mxu0 %v250
    %1186 = vmatprep.subr.bf16.mxu0 %v255
    %1187 = vmatpush1.bf16.msra.mxu0 %v254
    %1188 = vmatprep.subr.bf16.mxu0 0
    %1189 = vmatpush1.bf16.msra.mxu0 0
    %1190 = vmatprep.subr.bf16.mxu0 0
    %1191 = vmatpush1.bf16.msra.mxu0 0
    %1192 = vmatprep.subr.bf16.mxu0 0
    %1193 = vmatpush1.bf16.msra.mxu0 0
    %1194 = vmatprep.subr.bf16.mxu0 0
    %1195 = vmatpush1.bf16.msra.mxu0 0
    %1196 = vmatprep.subr.bf16.mxu0 0
    %1197 = vmatpush1.bf16.msra.mxu0 0
    %1198 = vmatprep.subr.bf16.mxu0 0
    %1199 = vmatpush1.bf16.msra.mxu0 0
    %1200 = vmatprep.subr.bf16.mxu0 0
    %1201 = vmatpush1.bf16.msra.mxu0 0
    %1202 = vmatprep.subr.bf16.mxu0 0
    %1203 = vmatpush1.bf16.msra.mxu0 0
    %1204 = vmatprep.mubr.bf16.mxu0 0
    %1205 = vmatmul.mubr.bf16.gmra.mrb[0].mxu0 %v1171
    %v1206 = vpop.f32.mrb[0].mxu0
    %v1207 = vadd.f32 0.0, %v1206
    %v1208 = vpop.f32.mrb[0].mxu0
    %v1209 = vadd.f32 0.0, %v1208
    %v1210 = vpop.f32.mrb[0].mxu0
    %v1211 = vpop.f32.mrb[0].mxu0
    %1212 = vdwg.mxu0
    %1213 = vmatprep.subr.bf16.mxu0 %v229
    %1214 = vmatpush1.bf16.msra.mxu0 %v228
    %1215 = vmatprep.subr.bf16.mxu0 %v233
    %1216 = vmatpush1.bf16.msra.mxu0 %v232
    %1217 = vmatprep.subr.bf16.mxu0 %v237
    %1218 = vmatpush1.bf16.msra.mxu0 %v236
    %1219 = vmatprep.subr.bf16.mxu0 %v241
    %1220 = vmatpush1.bf16.msra.mxu0 %v240
    %1221 = vmatprep.subr.bf16.mxu0 %v245
    %1222 = vmatpush1.bf16.msra.mxu0 %v244
    %1223 = vmatprep.subr.bf16.mxu0 %v249
    %1224 = vmatpush1.bf16.msra.mxu0 %v248
    %1225 = vmatprep.subr.bf16.mxu0 %v253
    %1226 = vmatpush1.bf16.msra.mxu0 %v252
    %1227 = vmatprep.subr.bf16.mxu0 %v257
    %1228 = vmatpush1.bf16.msra.mxu0 %v256
    %1229 = vmatprep.subr.bf16.mxu0 0
    %1230 = vmatpush1.bf16.msra.mxu0 0
    %1231 = vmatprep.subr.bf16.mxu0 0
    %1232 = vmatpush1.bf16.msra.mxu0 0
    %1233 = vmatprep.subr.bf16.mxu0 0
    %1234 = vmatpush1.bf16.msra.mxu0 0
    %1235 = vmatprep.subr.bf16.mxu0 0
    %1236 = vmatpush1.bf16.msra.mxu0 0
    %1237 = vmatprep.subr.bf16.mxu0 0
    %1238 = vmatpush1.bf16.msra.mxu0 0
    %1239 = vmatprep.subr.bf16.mxu0 0
    %1240 = vmatpush1.bf16.msra.mxu0 0
    %1241 = vmatprep.subr.bf16.mxu0 0
    %1242 = vmatpush1.bf16.msra.mxu0 0
    %1243 = vmatprep.subr.bf16.mxu0 0
    %1244 = vmatpush1.bf16.msra.mxu0 0
    %1245 = vmatprep.mubr.bf16.mxu0 0
    %1246 = vmatmul.mubr.bf16.gmra.mrb[0].mxu0 %v1171
    %v1247 = vpop.f32.mrb[0].mxu0
    %v1248 = vadd.f32 0.0, %v1247
    %v1249 = vpop.f32.mrb[0].mxu0
    %v1250 = vadd.f32 0.0, %v1249
    %v1251 = vpop.f32.mrb[0].mxu0
    %v1252 = vpop.f32.mrb[0].mxu0
    %1253 = vdwg.mxu0
    %v1254 = vadd.f32 %v1167, %v1207
    %v1255 = vadd.f32 %v1168, %v1209
    %v1256 = vadd.f32 %v1169, %v1248
    %v1257 = vadd.f32 %v1170, %v1250
    %v1258 = vxor.u32 %v1254, 2147483648
    %v1259 = vxor.u32 %v1255, 2147483648
    %v1260 = vxor.u32 %v1256, 2147483648
    %v1261 = vmul.f32 %v1258, 1.442695
    %v1262 = vpow.pop %v1261
    %v1263 = vmul.f32 %v1259, 1.442695
    %v1264 = vpow.pop %v1263
    %v1265 = vmul.f32 %v1260, 1.442695
    %v1266 = vpow.pop %v1265
    %v1267 = vadd.f32 %v1262, 1.0
    %v1268 = vadd.f32 %v1264, 1.0
    %v1269 = vadd.f32 %v1266, 1.0
    %v1270 = vrcp.pop %v1267
    %v1271 = vmul.f32 1.0, %v1270
    %v1272 = vrcp.pop %v1268
    %v1273 = vmul.f32 1.0, %v1272
    %v1274 = vrcp.pop %v1269
    %v1275 = vmul.f32 1.0, %v1274
    %v1276 = vtanh.pop %v1257
    %v1277 = vmul.f32 %v1273, %v1153
    %v1278 = vmul.f32 %v1271, %v1276
    %v1279 = vadd.f32 %v1277, %v1278
    %v1280 = vtanh.pop %v1279
    %v1281 = vmul.f32 %v1275, %v1280
    %v1282 = vld [vmem:[%s4] sm:$0x1]
    %v1284 = vlaneseq
    %v1285 = vshrl.u32 %v1284, 7
    %v1286 = vsub.s32 0, %v1285
    %v1287 = vrot.slane %v1282, %v1286
    %v1289 = vmul.f32 %v1281, %v1287
    %vm1290 = vcmask 1041408
    %v1291 = vsel %vm1290, %v1289, 0.0
    %1292 = vadd.xlane.f32.xlu0 %v1291
    %v1293 = vpop.xlane.xlu0 %1292
    %v1294 = vld [vmem:[#allocation2] sm:$0x1]
    %v1296 = vlaneseq
    %v1297 = vshrl.u32 %v1296, 7
    %v1298 = vsub.s32 0, %v1297
    %v1299 = vrot.slane %v1294, %v1298
    %v1301 = vadd.f32 %v1293, %v1299
    %vm1302 = vcmask 1024
    %1303 = vst.msk [vmem:[%s6] sm:$0x3] %vm1302, %v1301
    // Predicated region
    $region30: #{lstm_forward.1} parent=1 // pred_check
      _
    $region31: #{lstm_forward.1} parent=1 // pred_check_branch
      %1305 = sbr.rel (0) target = $region33
    $region32: #{lstm_forward.1} parent=1 // pred_region
      _
    $region33: #{lstm_forward.1} parent=1 // pred_fallthru
      _
    // Predicated region
    $region34: #{lstm_forward.1} parent=1 // pred_check
      _
    $region35: #{lstm_forward.1} parent=1 // pred_check_branch
      %1307 = sbr.rel (0) target = $region37
    $region36: #{lstm_forward.1} parent=1 // pred_region
      _
    $region37: #{lstm_forward.1} parent=1 // pred_fallthru
      _
    %1308 = vsyncpa [#allocation4], 1

</llo_original>
